<compile_context>
chip_gen: v7x
topology: tpu7x:2x2x1
jax: 0.10.0
libtpu: 0.0.40
codegen_flags: <defaults>
</compile_context>

<pallas_src>
import functools

import jax
import jax.numpy as jnp
from jax import lax
from jax.experimental import pallas as pl
from jax.experimental.pallas import tpu as pltpu

# ----------------------- module hyper-parameters ---------------------------
KERNEL_SIZE = 4
STRIDE = 2
PADDING = 1

# GaussActivation parameters (already inside their clamp ranges).
GAUSS_A = 1.1
GAUSS_MU = 1.0
GAUSS_SIGMA1 = 0.5
GAUSS_SIGMA2 = 0.5
assert GAUSS_SIGMA1 == GAUSS_SIGMA2  # kernel shares one exp between branches

# MaskUpdate exponent
MASK_ALPHA = 0.8

_LANE = 128


def _round_up(x, m):
    return (x + m - 1) // m * m


# ------------------------------ Pallas kernel ------------------------------
def _reverse_mask_kernel(w_ref, x_ref, activ_ref, update_ref, *, row_stride):
    """One batch element per grid step.

    w_ref:      (16, Cout, Cin)           conv weight, kernel-position major
    x_ref:      (2, 2, Cin, L_pad)        pad-1 input, stride-2 deinterleaved
                                          and flattened: x_ref[a,b,c, r*(Wo+1)+s]
                                          == xpad[c, 2r+a, 2s+b]
    activ_ref:  (Cout, Mo), Mo=Ho*(Wo+1)  GaussActivation(maskFeatures)
    update_ref: (Cout, Mo)                relu(maskFeatures) ** 0.8
    """
    cout, mo = activ_ref.shape

    # Fused im2col: conv(k=4, s=2, p=1) == sum over 16 kernel positions of
    # (Cout,Cin) x (Cin,Mo) matmuls on shifted unit-stride slices of the
    # deinterleaved input.  Offsets are static: {0, 1, row_stride, row_stride+1}.
    acc = jnp.zeros((cout, mo), dtype=jnp.float32)
    for i in range(KERNEL_SIZE):
        for j in range(KERNEL_SIZE):
            off = (i // 2) * row_stride + (j // 2)
            slab = x_ref[i % 2, j % 2, :, pl.ds(off, mo)]          # (Cin, Mo)
            acc = acc + jnp.dot(w_ref[i * KERNEL_SIZE + j], slab,
                                preferred_element_type=jnp.float32)

    # GaussActivation (sigma1 == sigma2 -> a single shared EUP exp).
    diff = acc - GAUSS_MU
    e = jnp.exp(-GAUSS_SIGMA1 * (diff * diff))
    activ_ref[...] = jnp.where(acc < GAUSS_MU,
                               GAUSS_A * e,
                               1.0 + (GAUSS_A - 1.0) * e)

    # MaskUpdate: relu(f)**alpha == exp(alpha*log(relu(f)));
    # log(0) = -inf -> exp(-inf) = 0, so no zero-guard is needed.
    relu_f = jnp.maximum(acc, 0.0)
    update_ref[...] = jnp.exp(MASK_ALPHA * jnp.log(relu_f))


# ------------------------------- wrapper ------------------------------------
def _pad_and_deinterleave(x_nchw, compute_dtype):
    """(N,Cin,H,W) -> (N, 2, 2, Cin, L_pad): zero-pad 1 + stride-2 space-to-depth.

    out[n, a, b, c, r*(Wo+1)+s] == xpad[n, c, 2r+a, 2s+b]
    This is the only wrapper pass over the input (cast to compute_dtype fused).
    """
    n, c, h, w = x_nchw.shape
    ho, wo = h // 2, w // 2
    xp = jnp.pad(x_nchw.astype(compute_dtype),
                 ((0, 0), (0, 0), (PADDING, PADDING), (PADDING, PADDING)))
    xs = xp.reshape(n, c, ho + 1, 2, wo + 1, 2)
    xs = jnp.transpose(xs, (0, 3, 5, 1, 2, 4))        # (N, 2, 2, Cin, Ho+1, Wo+1)
    l = (ho + 1) * (wo + 1)
    # +1: the largest shifted slab (offset Wo+2) peeks one element past L.
    l_pad = _round_up(l + 1, _LANE)
    xf = xs.reshape(n, 2, 2, c, l)
    xf = jnp.pad(xf, ((0, 0), (0, 0), (0, 0), (0, 0), (0, l_pad - l)))
    return xf, ho, wo, l_pad


@functools.partial(jax.jit, static_argnames=("compute_dtype",))
def reverse_mask_conv(x_nchw, weight_oihw, *, compute_dtype=jnp.bfloat16):
    """Forward pass of ReverseMaskConv.

    x_nchw:       (N, Cin, H, W)       float32
    weight_oihw:  (Cout, Cin, 4, 4)    float32 (conv weight, bias=False)
    returns (maskActiv, maskUpdate), both (N, Cout, H//2, W//2) float32.
    compute_dtype=jnp.float32 gives full-precision MXU inputs (PyTorch parity).
    """
    n, cin, h, w = x_nchw.shape
    cout, cin_w, kh, kw = weight_oihw.shape
    assert cin == cin_w
    assert kh == KERNEL_SIZE and kw == KERNEL_SIZE
    assert h % 2 == 0 and w % 2 == 0, "k=4, s=2, p=1 path expects even H, W"

    xf, ho, wo, l_pad = _pad_and_deinterleave(x_nchw, compute_dtype)
    row_stride = wo + 1
    mo = ho * row_stride                       # flat output width incl. garbage col

    # Weight as 16 kernel-position (Cout, Cin) matrices: w16[i*4+j] == W[:,:,i,j].
    w16 = jnp.transpose(weight_oihw, (2, 3, 0, 1)).reshape(
        kh * kw, cout, cin).astype(compute_dtype)

    in_itemsize = jnp.dtype(compute_dtype).itemsize
    x_block_bytes = 4 * cin * l_pad * in_itemsize
    out_block_bytes = cout * mo * 4
    w_bytes = kh * kw * cout * _round_up(cin, _LANE) * in_itemsize
    # double-buffered input + 2 double-buffered outputs + acc temp + weight
    step_bytes = 2 * x_block_bytes + 4 * out_block_bytes + out_block_bytes + w_bytes
    # Raise the scoped-VMEM limit for big shapes (v5e default is only 16 MiB),
    # capped below v7x's 64 MiB physical VMEM.
    vmem_limit = int(min(max(2 * step_bytes, 32 * 2 ** 20), 48 * 2 ** 20))

    cost = pl.CostEstimate(
        flops=2 * n * kh * kw * cout * cin * mo,
        transcendentals=3 * n * cout * mo,
        bytes_accessed=(n * 4 * cin * l_pad * in_itemsize      # deinterleaved input
                        + kh * kw * cout * cin * in_itemsize   # weight
                        + 2 * n * out_block_bytes),            # two f32 outputs
    )

    out_struct = jax.ShapeDtypeStruct((n, cout, mo), jnp.float32)
    activ_flat, update_flat = pl.pallas_call(
        functools.partial(_reverse_mask_kernel, row_stride=row_stride),
        out_shape=(out_struct, out_struct),
        grid_spec=pl.GridSpec(
            grid=(n,),
            in_specs=[
                # tiny weight: resident across all grid steps
                pl.BlockSpec((kh * kw, cout, cin), lambda b: (0, 0, 0)),
                # one batch element of the deinterleaved input per step
                pl.BlockSpec((None, 2, 2, cin, l_pad),
                             lambda b: (b, 0, 0, 0, 0)),
            ],
            out_specs=(
                pl.BlockSpec((None, cout, mo), lambda b: (b, 0, 0)),
                pl.BlockSpec((None, cout, mo), lambda b: (b, 0, 0)),
            ),
        ),
        compiler_params=pltpu.CompilerParams(
            dimension_semantics=("parallel",),
            vmem_limit_bytes=vmem_limit,
        ),
        cost_estimate=cost,
    )(w16, xf)

    # (N, Cout, Ho*(Wo+1)) -> (N, Cout, Ho, Wo+1) is a free minor-dim reshape;
    # only the thin garbage column (index Wo) is trimmed.
    # TODO(synk): the trim materializes here in isolation but fuses into the
    # consumer in a real pipeline; emitting exactly Wo columns would need an
    # in-kernel (Cout, Ho*(Wo+1)) -> (Cout, Ho, Wo) relayout before the store.
    activ = activ_flat.reshape(n, cout, ho, row_stride)[..., :wo]
    update = update_flat.reshape(n, cout, ho, row_stride)[..., :wo]
    return activ, update


# --------------------------------- main -------------------------------------
if __name__ == "__main__":
    key = jax.random.PRNGKey(0)
    k_x, k_w = jax.random.split(key)

    N, CIN, H, W = 2, 4, 16, 16
    COUT = 8

    # Input masks in [0, 1], deterministic.
    x = jax.random.uniform(k_x, (N, CIN, H, W), dtype=jnp.float32)
    # weights_init(): Gaussian(0, 0.02) conv init, deterministic here.
    weight = 0.02 * jax.random.normal(
        k_w, (COUT, CIN, KERNEL_SIZE, KERNEL_SIZE), dtype=jnp.float32)

    mask_activ, mask_update = reverse_mask_conv(x, weight)
    jax.block_until_ready((mask_activ, mask_update))

    assert mask_activ.shape == (N, COUT, H // 2, W // 2)
    assert mask_update.shape == (N, COUT, H // 2, W // 2)

    # Pure-JAX reference using the same bf16-rounded operands, so only the
    # accumulation order differs from the in-kernel MXU path.
    x_bf = x.astype(jnp.bfloat16).astype(jnp.float32)
    w_bf = weight.astype(jnp.bfloat16).astype(jnp.float32)
    feats_ref = lax.conv_general_dilated(
        x_bf, w_bf, window_strides=(STRIDE, STRIDE),
        padding=((PADDING, PADDING), (PADDING, PADDING)),
        dimension_numbers=("NCHW", "OIHW", "NCHW"))
    d = feats_ref - GAUSS_MU
    e = jnp.exp(-GAUSS_SIGMA1 * d * d)
    activ_ref = jnp.where(feats_ref < GAUSS_MU,
                          GAUSS_A * e, 1.0 + (GAUSS_A - 1.0) * e)
    update_ref = jnp.maximum(feats_ref, 0.0) ** MASK_ALPHA

    assert bool(jnp.all(jnp.isfinite(mask_activ)))
    assert bool(jnp.all(jnp.isfinite(mask_update)))
    assert jnp.allclose(mask_activ, activ_ref, atol=1e-3, rtol=1e-3)
    assert jnp.allclose(mask_update, update_ref, atol=1e-3, rtol=1e-3)
    print("KERNEL_OK")
</pallas_src>

<mosaic_0001>
module attributes {stable_mosaic.version = 11 : i64} {
  func.func @_reverse_mask_kernel(%arg0: i32, %arg1: memref<16x8x4xbf16, #tpu.memory_space<vmem>>, %arg2: memref<1x2x2x4x128xbf16, #tpu.memory_space<vmem>>, %arg3: memref<1x8x72xf32, #tpu.memory_space<vmem>>, %arg4: memref<1x8x72xf32, #tpu.memory_space<vmem>>) attributes {dimension_semantics = [#tpu.dimension_semantics<parallel>], iteration_bounds = array<i64: 2>, scalar_prefetch = 0 : i64, scratch_operands = 0 : i64, tpu.core_type = #tpu.core_type<tc>, window_params = [{pipeline_mode = #tpu.pipeline_mode<synchronous>, transform_indices = @transform_0, window_bounds = array<i64: 16, 8, 4>}, {transform_indices = @transform_1, window_bounds = array<i64: 1, 2, 2, 4, 128>}, {transform_indices = @transform_2, window_bounds = array<i64: 1, 8, 72>}, {transform_indices = @transform_3, window_bounds = array<i64: 1, 8, 72>}]} {
    %cst = arith.constant 0.000000e+00 : f32
    %0 = vector.broadcast %cst : f32 to vector<8x72xf32>
    %c0 = arith.constant 0 : index
    %c0_0 = arith.constant 0 : index
    %c0_1 = arith.constant 0 : index
    %c0_2 = arith.constant 0 : index
    %c0_3 = arith.constant 0 : index
    %1 = vector.load %arg2[%c0, %c0_0, %c0_1, %c0_2, %c0_3] : memref<1x2x2x4x128xbf16, #tpu.memory_space<vmem>>, vector<1x1x1x4x72xbf16>
    %2 = vector.shape_cast %1 : vector<1x1x1x4x72xbf16> to vector<4x72xbf16>
    %c0_4 = arith.constant 0 : index
    %c0_5 = arith.constant 0 : index
    %c0_6 = arith.constant 0 : index
    %3 = vector.load %arg1[%c0_4, %c0_5, %c0_6] : memref<16x8x4xbf16, #tpu.memory_space<vmem>>, vector<1x8x4xbf16>
    %4 = vector.shape_cast %3 : vector<1x8x4xbf16> to vector<8x4xbf16>
    %cst_7 = arith.constant dense<0.000000e+00> : vector<8x72xf32>
    %5 = tpu.matmul %4, %2, %cst_7 {dimension_numbers = #tpu.dot_dimension_numbers<[1], [0], [0], [1], [0, 0, 1, 1], [], []>} : vector<8x4xbf16>, vector<4x72xbf16>, vector<8x72xf32> -> vector<8x72xf32>
    %6 = arith.addf %0, %5 : vector<8x72xf32>
    %c0_8 = arith.constant 0 : index
    %c0_9 = arith.constant 0 : index
    %c1 = arith.constant 1 : index
    %c0_10 = arith.constant 0 : index
    %c0_11 = arith.constant 0 : index
    %7 = vector.load %arg2[%c0_8, %c0_9, %c1, %c0_10, %c0_11] : memref<1x2x2x4x128xbf16, #tpu.memory_space<vmem>>, vector<1x1x1x4x72xbf16>
    %8 = vector.shape_cast %7 : vector<1x1x1x4x72xbf16> to vector<4x72xbf16>
    %c1_12 = arith.constant 1 : index
    %c0_13 = arith.constant 0 : index
    %c0_14 = arith.constant 0 : index
    %9 = vector.load %arg1[%c1_12, %c0_13, %c0_14] : memref<16x8x4xbf16, #tpu.memory_space<vmem>>, vector<1x8x4xbf16>
    %10 = vector.shape_cast %9 : vector<1x8x4xbf16> to vector<8x4xbf16>
    %cst_15 = arith.constant dense<0.000000e+00> : vector<8x72xf32>
    %11 = tpu.matmul %10, %8, %cst_15 {dimension_numbers = #tpu.dot_dimension_numbers<[1], [0], [0], [1], [0, 0, 1, 1], [], []>} : vector<8x4xbf16>, vector<4x72xbf16>, vector<8x72xf32> -> vector<8x72xf32>
    %12 = arith.addf %6, %11 : vector<8x72xf32>
    %c0_16 = arith.constant 0 : index
    %c0_17 = arith.constant 0 : index
    %c0_18 = arith.constant 0 : index
    %c0_19 = arith.constant 0 : index
    %c1_20 = arith.constant 1 : index
    %13 = vector.load %arg2[%c0_16, %c0_17, %c0_18, %c0_19, %c1_20] : memref<1x2x2x4x128xbf16, #tpu.memory_space<vmem>>, vector<1x1x1x4x72xbf16>
    %14 = vector.shape_cast %13 : vector<1x1x1x4x72xbf16> to vector<4x72xbf16>
    %c2 = arith.constant 2 : index
    %c0_21 = arith.constant 0 : index
    %c0_22 = arith.constant 0 : index
    %15 = vector.load %arg1[%c2, %c0_21, %c0_22] : memref<16x8x4xbf16, #tpu.memory_space<vmem>>, vector<1x8x4xbf16>
    %16 = vector.shape_cast %15 : vector<1x8x4xbf16> to vector<8x4xbf16>
    %cst_23 = arith.constant dense<0.000000e+00> : vector<8x72xf32>
    %17 = tpu.matmul %16, %14, %cst_23 {dimension_numbers = #tpu.dot_dimension_numbers<[1], [0], [0], [1], [0, 0, 1, 1], [], []>} : vector<8x4xbf16>, vector<4x72xbf16>, vector<8x72xf32> -> vector<8x72xf32>
    %18 = arith.addf %12, %17 : vector<8x72xf32>
    %c0_24 = arith.constant 0 : index
    %c0_25 = arith.constant 0 : index
    %c1_26 = arith.constant 1 : index
    %c0_27 = arith.constant 0 : index
    %c1_28 = arith.constant 1 : index
    %19 = vector.load %arg2[%c0_24, %c0_25, %c1_26, %c0_27, %c1_28] : memref<1x2x2x4x128xbf16, #tpu.memory_space<vmem>>, vector<1x1x1x4x72xbf16>
    %20 = vector.shape_cast %19 : vector<1x1x1x4x72xbf16> to vector<4x72xbf16>
    %c3 = arith.constant 3 : index
    %c0_29 = arith.constant 0 : index
    %c0_30 = arith.constant 0 : index
    %21 = vector.load %arg1[%c3, %c0_29, %c0_30] : memref<16x8x4xbf16, #tpu.memory_space<vmem>>, vector<1x8x4xbf16>
    %22 = vector.shape_cast %21 : vector<1x8x4xbf16> to vector<8x4xbf16>
    %cst_31 = arith.constant dense<0.000000e+00> : vector<8x72xf32>
    %23 = tpu.matmul %22, %20, %cst_31 {dimension_numbers = #tpu.dot_dimension_numbers<[1], [0], [0], [1], [0, 0, 1, 1], [], []>} : vector<8x4xbf16>, vector<4x72xbf16>, vector<8x72xf32> -> vector<8x72xf32>
    %24 = arith.addf %18, %23 : vector<8x72xf32>
    %c0_32 = arith.constant 0 : index
    %c1_33 = arith.constant 1 : index
    %c0_34 = arith.constant 0 : index
    %c0_35 = arith.constant 0 : index
    %c0_36 = arith.constant 0 : index
    %25 = vector.load %arg2[%c0_32, %c1_33, %c0_34, %c0_35, %c0_36] : memref<1x2x2x4x128xbf16, #tpu.memory_space<vmem>>, vector<1x1x1x4x72xbf16>
    %26 = vector.shape_cast %25 : vector<1x1x1x4x72xbf16> to vector<4x72xbf16>
    %c4 = arith.constant 4 : index
    %c0_37 = arith.constant 0 : index
    %c0_38 = arith.constant 0 : index
    %27 = vector.load %arg1[%c4, %c0_37, %c0_38] : memref<16x8x4xbf16, #tpu.memory_space<vmem>>, vector<1x8x4xbf16>
    %28 = vector.shape_cast %27 : vector<1x8x4xbf16> to vector<8x4xbf16>
    %cst_39 = arith.constant dense<0.000000e+00> : vector<8x72xf32>
    %29 = tpu.matmul %28, %26, %cst_39 {dimension_numbers = #tpu.dot_dimension_numbers<[1], [0], [0], [1], [0, 0, 1, 1], [], []>} : vector<8x4xbf16>, vector<4x72xbf16>, vector<8x72xf32> -> vector<8x72xf32>
    %30 = arith.addf %24, %29 : vector<8x72xf32>
    %c0_40 = arith.constant 0 : index
    %c1_41 = arith.constant 1 : index
    %c1_42 = arith.constant 1 : index
    %c0_43 = arith.constant 0 : index
    %c0_44 = arith.constant 0 : index
    %31 = vector.load %arg2[%c0_40, %c1_41, %c1_42, %c0_43, %c0_44] : memref<1x2x2x4x128xbf16, #tpu.memory_space<vmem>>, vector<1x1x1x4x72xbf16>
    %32 = vector.shape_cast %31 : vector<1x1x1x4x72xbf16> to vector<4x72xbf16>
    %c5 = arith.constant 5 : index
    %c0_45 = arith.constant 0 : index
    %c0_46 = arith.constant 0 : index
    %33 = vector.load %arg1[%c5, %c0_45, %c0_46] : memref<16x8x4xbf16, #tpu.memory_space<vmem>>, vector<1x8x4xbf16>
    %34 = vector.shape_cast %33 : vector<1x8x4xbf16> to vector<8x4xbf16>
    %cst_47 = arith.constant dense<0.000000e+00> : vector<8x72xf32>
    %35 = tpu.matmul %34, %32, %cst_47 {dimension_numbers = #tpu.dot_dimension_numbers<[1], [0], [0], [1], [0, 0, 1, 1], [], []>} : vector<8x4xbf16>, vector<4x72xbf16>, vector<8x72xf32> -> vector<8x72xf32>
    %36 = arith.addf %30, %35 : vector<8x72xf32>
    %c0_48 = arith.constant 0 : index
    %c1_49 = arith.constant 1 : index
    %c0_50 = arith.constant 0 : index
    %c0_51 = arith.constant 0 : index
    %c1_52 = arith.constant 1 : index
    %37 = vector.load %arg2[%c0_48, %c1_49, %c0_50, %c0_51, %c1_52] : memref<1x2x2x4x128xbf16, #tpu.memory_space<vmem>>, vector<1x1x1x4x72xbf16>
    %38 = vector.shape_cast %37 : vector<1x1x1x4x72xbf16> to vector<4x72xbf16>
    %c6 = arith.constant 6 : index
    %c0_53 = arith.constant 0 : index
    %c0_54 = arith.constant 0 : index
    %39 = vector.load %arg1[%c6, %c0_53, %c0_54] : memref<16x8x4xbf16, #tpu.memory_space<vmem>>, vector<1x8x4xbf16>
    %40 = vector.shape_cast %39 : vector<1x8x4xbf16> to vector<8x4xbf16>
    %cst_55 = arith.constant dense<0.000000e+00> : vector<8x72xf32>
    %41 = tpu.matmul %40, %38, %cst_55 {dimension_numbers = #tpu.dot_dimension_numbers<[1], [0], [0], [1], [0, 0, 1, 1], [], []>} : vector<8x4xbf16>, vector<4x72xbf16>, vector<8x72xf32> -> vector<8x72xf32>
    %42 = arith.addf %36, %41 : vector<8x72xf32>
    %c0_56 = arith.constant 0 : index
    %c1_57 = arith.constant 1 : index
    %c1_58 = arith.constant 1 : index
    %c0_59 = arith.constant 0 : index
    %c1_60 = arith.constant 1 : index
    %43 = vector.load %arg2[%c0_56, %c1_57, %c1_58, %c0_59, %c1_60] : memref<1x2x2x4x128xbf16, #tpu.memory_space<vmem>>, vector<1x1x1x4x72xbf16>
    %44 = vector.shape_cast %43 : vector<1x1x1x4x72xbf16> to vector<4x72xbf16>
    %c7 = arith.constant 7 : index
    %c0_61 = arith.constant 0 : index
    %c0_62 = arith.constant 0 : index
    %45 = vector.load %arg1[%c7, %c0_61, %c0_62] : memref<16x8x4xbf16, #tpu.memory_space<vmem>>, vector<1x8x4xbf16>
    %46 = vector.shape_cast %45 : vector<1x8x4xbf16> to vector<8x4xbf16>
    %cst_63 = arith.constant dense<0.000000e+00> : vector<8x72xf32>
    %47 = tpu.matmul %46, %44, %cst_63 {dimension_numbers = #tpu.dot_dimension_numbers<[1], [0], [0], [1], [0, 0, 1, 1], [], []>} : vector<8x4xbf16>, vector<4x72xbf16>, vector<8x72xf32> -> vector<8x72xf32>
    %48 = arith.addf %42, %47 : vector<8x72xf32>
    %c0_64 = arith.constant 0 : index
    %c0_65 = arith.constant 0 : index
    %c0_66 = arith.constant 0 : index
    %c0_67 = arith.constant 0 : index
    %c9 = arith.constant 9 : index
    %49 = vector.load %arg2[%c0_64, %c0_65, %c0_66, %c0_67, %c9] : memref<1x2x2x4x128xbf16, #tpu.memory_space<vmem>>, vector<1x1x1x4x72xbf16>
    %50 = vector.shape_cast %49 : vector<1x1x1x4x72xbf16> to vector<4x72xbf16>
    %c8 = arith.constant 8 : index
    %c0_68 = arith.constant 0 : index
    %c0_69 = arith.constant 0 : index
    %51 = vector.load %arg1[%c8, %c0_68, %c0_69] : memref<16x8x4xbf16, #tpu.memory_space<vmem>>, vector<1x8x4xbf16>
    %52 = vector.shape_cast %51 : vector<1x8x4xbf16> to vector<8x4xbf16>
    %cst_70 = arith.constant dense<0.000000e+00> : vector<8x72xf32>
    %53 = tpu.matmul %52, %50, %cst_70 {dimension_numbers = #tpu.dot_dimension_numbers<[1], [0], [0], [1], [0, 0, 1, 1], [], []>} : vector<8x4xbf16>, vector<4x72xbf16>, vector<8x72xf32> -> vector<8x72xf32>
    %54 = arith.addf %48, %53 : vector<8x72xf32>
    %c0_71 = arith.constant 0 : index
    %c0_72 = arith.constant 0 : index
    %c1_73 = arith.constant 1 : index
    %c0_74 = arith.constant 0 : index
    %c9_75 = arith.constant 9 : index
    %55 = vector.load %arg2[%c0_71, %c0_72, %c1_73, %c0_74, %c9_75] : memref<1x2x2x4x128xbf16, #tpu.memory_space<vmem>>, vector<1x1x1x4x72xbf16>
    %56 = vector.shape_cast %55 : vector<1x1x1x4x72xbf16> to vector<4x72xbf16>
    %c9_76 = arith.constant 9 : index
    %c0_77 = arith.constant 0 : index
    %c0_78 = arith.constant 0 : index
    %57 = vector.load %arg1[%c9_76, %c0_77, %c0_78] : memref<16x8x4xbf16, #tpu.memory_space<vmem>>, vector<1x8x4xbf16>
    %58 = vector.shape_cast %57 : vector<1x8x4xbf16> to vector<8x4xbf16>
    %cst_79 = arith.constant dense<0.000000e+00> : vector<8x72xf32>
    %59 = tpu.matmul %58, %56, %cst_79 {dimension_numbers = #tpu.dot_dimension_numbers<[1], [0], [0], [1], [0, 0, 1, 1], [], []>} : vector<8x4xbf16>, vector<4x72xbf16>, vector<8x72xf32> -> vector<8x72xf32>
    %60 = arith.addf %54, %59 : vector<8x72xf32>
    %c0_80 = arith.constant 0 : index
    %c0_81 = arith.constant 0 : index
    %c0_82 = arith.constant 0 : index
    %c0_83 = arith.constant 0 : index
    %c10 = arith.constant 10 : index
    %61 = vector.load %arg2[%c0_80, %c0_81, %c0_82, %c0_83, %c10] : memref<1x2x2x4x128xbf16, #tpu.memory_space<vmem>>, vector<1x1x1x4x72xbf16>
    %62 = vector.shape_cast %61 : vector<1x1x1x4x72xbf16> to vector<4x72xbf16>
    %c10_84 = arith.constant 10 : index
    %c0_85 = arith.constant 0 : index
    %c0_86 = arith.constant 0 : index
    %63 = vector.load %arg1[%c10_84, %c0_85, %c0_86] : memref<16x8x4xbf16, #tpu.memory_space<vmem>>, vector<1x8x4xbf16>
    %64 = vector.shape_cast %63 : vector<1x8x4xbf16> to vector<8x4xbf16>
    %cst_87 = arith.constant dense<0.000000e+00> : vector<8x72xf32>
    %65 = tpu.matmul %64, %62, %cst_87 {dimension_numbers = #tpu.dot_dimension_numbers<[1], [0], [0], [1], [0, 0, 1, 1], [], []>} : vector<8x4xbf16>, vector<4x72xbf16>, vector<8x72xf32> -> vector<8x72xf32>
    %66 = arith.addf %60, %65 : vector<8x72xf32>
    %c0_88 = arith.constant 0 : index
    %c0_89 = arith.constant 0 : index
    %c1_90 = arith.constant 1 : index
    %c0_91 = arith.constant 0 : index
    %c10_92 = arith.constant 10 : index
    %67 = vector.load %arg2[%c0_88, %c0_89, %c1_90, %c0_91, %c10_92] : memref<1x2x2x4x128xbf16, #tpu.memory_space<vmem>>, vector<1x1x1x4x72xbf16>
    %68 = vector.shape_cast %67 : vector<1x1x1x4x72xbf16> to vector<4x72xbf16>
    %c11 = arith.constant 11 : index
    %c0_93 = arith.constant 0 : index
    %c0_94 = arith.constant 0 : index
    %69 = vector.load %arg1[%c11, %c0_93, %c0_94] : memref<16x8x4xbf16, #tpu.memory_space<vmem>>, vector<1x8x4xbf16>
    %70 = vector.shape_cast %69 : vector<1x8x4xbf16> to vector<8x4xbf16>
    %cst_95 = arith.constant dense<0.000000e+00> : vector<8x72xf32>
    %71 = tpu.matmul %70, %68, %cst_95 {dimension_numbers = #tpu.dot_dimension_numbers<[1], [0], [0], [1], [0, 0, 1, 1], [], []>} : vector<8x4xbf16>, vector<4x72xbf16>, vector<8x72xf32> -> vector<8x72xf32>
    %72 = arith.addf %66, %71 : vector<8x72xf32>
    %c0_96 = arith.constant 0 : index
    %c1_97 = arith.constant 1 : index
    %c0_98 = arith.constant 0 : index
    %c0_99 = arith.constant 0 : index
    %c9_100 = arith.constant 9 : index
    %73 = vector.load %arg2[%c0_96, %c1_97, %c0_98, %c0_99, %c9_100] : memref<1x2x2x4x128xbf16, #tpu.memory_space<vmem>>, vector<1x1x1x4x72xbf16>
    %74 = vector.shape_cast %73 : vector<1x1x1x4x72xbf16> to vector<4x72xbf16>
    %c12 = arith.constant 12 : index
    %c0_101 = arith.constant 0 : index
    %c0_102 = arith.constant 0 : index
    %75 = vector.load %arg1[%c12, %c0_101, %c0_102] : memref<16x8x4xbf16, #tpu.memory_space<vmem>>, vector<1x8x4xbf16>
    %76 = vector.shape_cast %75 : vector<1x8x4xbf16> to vector<8x4xbf16>
    %cst_103 = arith.constant dense<0.000000e+00> : vector<8x72xf32>
    %77 = tpu.matmul %76, %74, %cst_103 {dimension_numbers = #tpu.dot_dimension_numbers<[1], [0], [0], [1], [0, 0, 1, 1], [], []>} : vector<8x4xbf16>, vector<4x72xbf16>, vector<8x72xf32> -> vector<8x72xf32>
    %78 = arith.addf %72, %77 : vector<8x72xf32>
    %c0_104 = arith.constant 0 : index
    %c1_105 = arith.constant 1 : index
    %c1_106 = arith.constant 1 : index
    %c0_107 = arith.constant 0 : index
    %c9_108 = arith.constant 9 : index
    %79 = vector.load %arg2[%c0_104, %c1_105, %c1_106, %c0_107, %c9_108] : memref<1x2x2x4x128xbf16, #tpu.memory_space<vmem>>, vector<1x1x1x4x72xbf16>
    %80 = vector.shape_cast %79 : vector<1x1x1x4x72xbf16> to vector<4x72xbf16>
    %c13 = arith.constant 13 : index
    %c0_109 = arith.constant 0 : index
    %c0_110 = arith.constant 0 : index
    %81 = vector.load %arg1[%c13, %c0_109, %c0_110] : memref<16x8x4xbf16, #tpu.memory_space<vmem>>, vector<1x8x4xbf16>
    %82 = vector.shape_cast %81 : vector<1x8x4xbf16> to vector<8x4xbf16>
    %cst_111 = arith.constant dense<0.000000e+00> : vector<8x72xf32>
    %83 = tpu.matmul %82, %80, %cst_111 {dimension_numbers = #tpu.dot_dimension_numbers<[1], [0], [0], [1], [0, 0, 1, 1], [], []>} : vector<8x4xbf16>, vector<4x72xbf16>, vector<8x72xf32> -> vector<8x72xf32>
    %84 = arith.addf %78, %83 : vector<8x72xf32>
    %c0_112 = arith.constant 0 : index
    %c1_113 = arith.constant 1 : index
    %c0_114 = arith.constant 0 : index
    %c0_115 = arith.constant 0 : index
    %c10_116 = arith.constant 10 : index
    %85 = vector.load %arg2[%c0_112, %c1_113, %c0_114, %c0_115, %c10_116] : memref<1x2x2x4x128xbf16, #tpu.memory_space<vmem>>, vector<1x1x1x4x72xbf16>
    %86 = vector.shape_cast %85 : vector<1x1x1x4x72xbf16> to vector<4x72xbf16>
    %c14 = arith.constant 14 : index
    %c0_117 = arith.constant 0 : index
    %c0_118 = arith.constant 0 : index
    %87 = vector.load %arg1[%c14, %c0_117, %c0_118] : memref<16x8x4xbf16, #tpu.memory_space<vmem>>, vector<1x8x4xbf16>
    %88 = vector.shape_cast %87 : vector<1x8x4xbf16> to vector<8x4xbf16>
    %cst_119 = arith.constant dense<0.000000e+00> : vector<8x72xf32>
    %89 = tpu.matmul %88, %86, %cst_119 {dimension_numbers = #tpu.dot_dimension_numbers<[1], [0], [0], [1], [0, 0, 1, 1], [], []>} : vector<8x4xbf16>, vector<4x72xbf16>, vector<8x72xf32> -> vector<8x72xf32>
    %90 = arith.addf %84, %89 : vector<8x72xf32>
    %c0_120 = arith.constant 0 : index
    %c1_121 = arith.constant 1 : index
    %c1_122 = arith.constant 1 : index
    %c0_123 = arith.constant 0 : index
    %c10_124 = arith.constant 10 : index
    %91 = vector.load %arg2[%c0_120, %c1_121, %c1_122, %c0_123, %c10_124] : memref<1x2x2x4x128xbf16, #tpu.memory_space<vmem>>, vector<1x1x1x4x72xbf16>
    %92 = vector.shape_cast %91 : vector<1x1x1x4x72xbf16> to vector<4x72xbf16>
    %c15 = arith.constant 15 : index
    %c0_125 = arith.constant 0 : index
    %c0_126 = arith.constant 0 : index
    %93 = vector.load %arg1[%c15, %c0_125, %c0_126] : memref<16x8x4xbf16, #tpu.memory_space<vmem>>, vector<1x8x4xbf16>
    %94 = vector.shape_cast %93 : vector<1x8x4xbf16> to vector<8x4xbf16>
    %cst_127 = arith.constant dense<0.000000e+00> : vector<8x72xf32>
    %95 = tpu.matmul %94, %92, %cst_127 {dimension_numbers = #tpu.dot_dimension_numbers<[1], [0], [0], [1], [0, 0, 1, 1], [], []>} : vector<8x4xbf16>, vector<4x72xbf16>, vector<8x72xf32> -> vector<8x72xf32>
    %96 = arith.addf %90, %95 : vector<8x72xf32>
    %cst_128 = arith.constant 1.000000e+00 : f32
    %97 = vector.broadcast %cst_128 : f32 to vector<8x72xf32>
    %98 = arith.subf %96, %97 : vector<8x72xf32>
    %99 = arith.mulf %98, %98 : vector<8x72xf32>
    %cst_129 = arith.constant -5.000000e-01 : f32
    %100 = vector.broadcast %cst_129 : f32 to vector<8x72xf32>
    %101 = arith.mulf %100, %99 : vector<8x72xf32>
    %102 = math.exp %101 : vector<8x72xf32>
    %cst_130 = arith.constant 1.000000e+00 : f32
    %103 = vector.broadcast %cst_130 : f32 to vector<8x72xf32>
    %104 = arith.cmpf olt, %96, %103 : vector<8x72xf32>
    %cst_131 = arith.constant 1.100000e+00 : f32
    %105 = vector.broadcast %cst_131 : f32 to vector<8x72xf32>
    %106 = arith.mulf %105, %102 : vector<8x72xf32>
    %cst_132 = arith.constant 1.000000e-01 : f32
    %107 = vector.broadcast %cst_132 : f32 to vector<8x72xf32>
    %108 = arith.mulf %107, %102 : vector<8x72xf32>
    %cst_133 = arith.constant 1.000000e+00 : f32
    %109 = vector.broadcast %cst_133 : f32 to vector<8x72xf32>
    %110 = arith.addf %109, %108 : vector<8x72xf32>
    %111 = arith.select %104, %106, %110 : vector<8x72xi1>, vector<8x72xf32>
    %c0_134 = arith.constant 0 : index
    %c0_135 = arith.constant 0 : index
    %c0_136 = arith.constant 0 : index
    %112 = vector.load %arg3[%c0_134, %c0_135, %c0_136] : memref<1x8x72xf32, #tpu.memory_space<vmem>>, vector<1x8x72xf32>
    %113 = vector.shape_cast %112 : vector<1x8x72xf32> to vector<8x72xf32>
    %114 = vector.shape_cast %111 : vector<8x72xf32> to vector<1x8x72xf32>
    tpu.vector_store %arg3[%c0_134, %c0_135, %c0_136], %114 {strides = array<i32>} : memref<1x8x72xf32, #tpu.memory_space<vmem>>, vector<1x8x72xf32>,
    %cst_137 = arith.constant 0.000000e+00 : f32
    %115 = vector.broadcast %cst_137 : f32 to vector<8x72xf32>
    %116 = arith.maximumf %96, %115 : vector<8x72xf32>
    %117 = math.log %116 : vector<8x72xf32>
    %cst_138 = arith.constant 8.000000e-01 : f32
    %118 = vector.broadcast %cst_138 : f32 to vector<8x72xf32>
    %119 = arith.mulf %118, %117 : vector<8x72xf32>
    %120 = math.exp %119 : vector<8x72xf32>
    %c0_139 = arith.constant 0 : index
    %c0_140 = arith.constant 0 : index
    %c0_141 = arith.constant 0 : index
    %121 = vector.load %arg4[%c0_139, %c0_140, %c0_141] : memref<1x8x72xf32, #tpu.memory_space<vmem>>, vector<1x8x72xf32>
    %122 = vector.shape_cast %121 : vector<1x8x72xf32> to vector<8x72xf32>
    %123 = vector.shape_cast %120 : vector<8x72xf32> to vector<1x8x72xf32>
    tpu.vector_store %arg4[%c0_139, %c0_140, %c0_141], %123 {strides = array<i32>} : memref<1x8x72xf32, #tpu.memory_space<vmem>>, vector<1x8x72xf32>,
    return
  }
  func.func @transform_0(%arg0: i32) -> (i32, i32, i32) {
    %c0_i32 = arith.constant 0 : i32
    %c0_i32_0 = arith.constant 0 : i32
    %c0_i32_1 = arith.constant 0 : i32
    %c0_i32_2 = arith.constant 0 : i32
    return %c0_i32, %c0_i32_0, %c0_i32_1 : i32, i32, i32
  }
  func.func @transform_1(%arg0: i32) -> (i32, i32, i32, i32, i32) {
    %c0_i32 = arith.constant 0 : i32
    %c0_i32_0 = arith.constant 0 : i32
    %c0_i32_1 = arith.constant 0 : i32
    %c0_i32_2 = arith.constant 0 : i32
    %c0_i32_3 = arith.constant 0 : i32
    return %arg0, %c0_i32, %c0_i32_0, %c0_i32_1, %c0_i32_2 : i32, i32, i32, i32, i32
  }
  func.func @transform_2(%arg0: i32) -> (i32, i32, i32) {
    %c0_i32 = arith.constant 0 : i32
    %c0_i32_0 = arith.constant 0 : i32
    %c0_i32_1 = arith.constant 0 : i32
    return %arg0, %c0_i32, %c0_i32_0 : i32, i32, i32
  }
  func.func @transform_3(%arg0: i32) -> (i32, i32, i32) {
    %c0_i32 = arith.constant 0 : i32
    %c0_i32_0 = arith.constant 0 : i32
    %c0_i32_1 = arith.constant 0 : i32
    return %arg0, %c0_i32, %c0_i32_0 : i32, i32, i32
  }
}

</mosaic_0001>

<llo_original>
// kernel: reverse_mask_conv.1
$region0: #{reverse_mask_conv.1}
  #allocation0 [shape = 'u32[]', space=smem, size = 0x4, offset = 0x4, fixed_abs, tag = 'smem constant byte address 0x4 - core index']
  #allocation1 [shape = 'u32[144,128]{1,0:T(1,128)}', space=vmem, size = 0x12000, scoped, tag = 'internal scratch']
  %s0 = inlined_call_operand.vmem [shape: bf16[16,8,4], index: 0, kind: input, shape index: {}]
  %s1 = inlined_call_operand.vmem [shape: bf16[2,2,2,4,128], index: 1, kind: input, shape index: {}]
  %s2 = inlined_call_operand.vmem [shape: f32[2,8,72], index: 2, kind: output, shape index: {0}]
  %s3 = inlined_call_operand.vmem [shape: f32[2,8,72], index: 3, kind: output, shape index: {1}]
  %4 = xla_tuple %s2, %s3
  %s5 = sld [smem:[#allocation0]]
  $region49: #{reverse_mask_conv.1} parent=0
    _
  %s7 = ssub.s32 1, %s5
  %s8 = scalar_select 0, %s7, %s5
  loop: start=0, step=1, limit=4
  $region2: #{reverse_mask_conv.1} parent=0 // loop_pre_header
    _
  $region3: #{reverse_mask_conv.1} parent=0 // loop_header
    %s10 = sphi 0, %s14
    %p11 = scmp.ge.s32.totalorder %s10, 4
    %s18 = sphi 0, %s18
    %s20 = sphi 0, %s18
    %s21 = sphi 0, %s20
    %s35 = sphi 0, %s21
    %s41 = sphi 0, %s43
    %s44 = sphi 0, %s41
    %s45 = sphi 0, %s44
    %s61 = sphi 0, %s45
    %s67 = sphi 0, %s69
    %s70 = sphi 0, %s67
    %s71 = sphi 0, %s70
    %s87 = sphi 0, %s71
    %s93 = sphi 0, %s95
    %s96 = sphi 0, %s93
    %s97 = sphi 0, %s96
    %s113 = sphi 0, %s97
  $region4: #{reverse_mask_conv.1} parent=0 // loop_header_branch
    %13 = sbr.rel (%p11) target = $region8
  $region5: #{reverse_mask_conv.1} parent=0 // loop_body
    %s15 = ssub.s32 %s10, 1
    %s16 = ssub.s32 %s10, 2
    %s17 = sadd.s32 %s10, 1
    %s19 = sadd.s32 %s18, 1
    %p22 = scmp.eq.s32.totalorder %s10, 1
    %p23 = scmp.ne.s32.totalorder %s18, %s20
    %p24 = scmp.eq.s32.totalorder %s10, 0
    %p25 = por %p23, %p24
    %p26 = scmp.ne.s32.totalorder %s18, %s20
    %p27 = scmp.eq.s32.totalorder %s15, 1
    %p28 = por %p26, %p27
    %p29 = scmp.ne.s32.totalorder %s20, %s21
    %p30 = scmp.eq.s32.totalorder %s15, 0
    %p31 = por %p29, %p30
    %p32 = scmp.ne.s32.totalorder %s20, %s21
    %p33 = scmp.eq.s32.totalorder %s16, 1
    %p34 = por %p32, %p33
    %p36 = scmp.ne.s32.totalorder %s21, %s35
    %p37 = scmp.eq.s32.totalorder %s16, 0
    %p38 = por %p36, %p37
    %s39 = ssub.s32 %s10, %s17
    %p40 = scmp.eq.s32.totalorder %s39, 0
    %s42 = sadd.s32 %s41, 1
    %s43 = scalar_select %p40, %s41, %s42
    %p46 = pneg %p40
    %p47 = scmp.eq.s32.totalorder %s10, 1
    %p48 = por %p46, %p47
    %p49 = scmp.ne.s32.totalorder %s41, %s44
    %p50 = scmp.eq.s32.totalorder %s10, 0
    %p51 = por %p49, %p50
    %p52 = scmp.ne.s32.totalorder %s41, %s44
    %p53 = scmp.eq.s32.totalorder %s15, 1
    %p54 = por %p52, %p53
    %p55 = scmp.ne.s32.totalorder %s44, %s45
    %p56 = scmp.eq.s32.totalorder %s15, 0
    %p57 = por %p55, %p56
    %p58 = scmp.ne.s32.totalorder %s44, %s45
    %p59 = scmp.eq.s32.totalorder %s16, 1
    %p60 = por %p58, %p59
    %p62 = scmp.ne.s32.totalorder %s45, %s61
    %p63 = scmp.eq.s32.totalorder %s16, 0
    %p64 = por %p62, %p63
    %s65 = ssub.s32 %s10, %s17
    %p66 = scmp.eq.s32.totalorder %s65, 0
    %s68 = sadd.s32 %s67, 1
    %s69 = scalar_select %p66, %s67, %s68
    %p72 = pneg %p66
    %p73 = scmp.eq.s32.totalorder %s10, 1
    %p74 = por %p72, %p73
    %p75 = scmp.ne.s32.totalorder %s67, %s70
    %p76 = scmp.eq.s32.totalorder %s10, 0
    %p77 = por %p75, %p76
    %p78 = scmp.ne.s32.totalorder %s67, %s70
    %p79 = scmp.eq.s32.totalorder %s15, 1
    %p80 = por %p78, %p79
    %p81 = scmp.ne.s32.totalorder %s70, %s71
    %p82 = scmp.eq.s32.totalorder %s15, 0
    %p83 = por %p81, %p82
    %p84 = scmp.ne.s32.totalorder %s70, %s71
    %p85 = scmp.eq.s32.totalorder %s16, 1
    %p86 = por %p84, %p85
    %p88 = scmp.ne.s32.totalorder %s71, %s87
    %p89 = scmp.eq.s32.totalorder %s16, 0
    %p90 = por %p88, %p89
    %s91 = ssub.s32 %s10, %s17
    %p92 = scmp.eq.s32.totalorder %s91, 0
    %s94 = sadd.s32 %s93, 1
    %s95 = scalar_select %p92, %s93, %s94
    %p98 = pneg %p92
    %p99 = scmp.eq.s32.totalorder %s10, 1
    %p100 = por %p98, %p99
    %p101 = scmp.ne.s32.totalorder %s93, %s96
    %p102 = scmp.eq.s32.totalorder %s10, 0
    %p103 = por %p101, %p102
    %p104 = scmp.ne.s32.totalorder %s93, %s96
    %p105 = scmp.eq.s32.totalorder %s15, 1
    %p106 = por %p104, %p105
    %p107 = scmp.ne.s32.totalorder %s96, %s97
    %p108 = scmp.eq.s32.totalorder %s15, 0
    %p109 = por %p107, %p108
    %p110 = scmp.ne.s32.totalorder %s96, %s97
    %p111 = scmp.eq.s32.totalorder %s16, 1
    %p112 = por %p110, %p111
    %p114 = scmp.ne.s32.totalorder %s97, %s113
    %p115 = scmp.eq.s32.totalorder %s16, 0
    %p116 = por %p114, %p115
    %p117 = scmp.le.s32.totalorder 1, %s10
    %p118 = scmp.lt.s32.totalorder %s10, 3
    %p119 = pnand %p117, %p118
    %p120 = pneg %p119
    // Predicated region
    $region9: #{reverse_mask_conv.1} parent=5 // pred_check
      _
    $region10: #{reverse_mask_conv.1} parent=5 // pred_check_branch
      %122 = sbr.rel (%p119) target = $region12
    $region11: #{reverse_mask_conv.1} parent=5 // pred_region
      %s123 = ssub.s32 %s10, 1
      // Predicated region
      $region13: #{reverse_mask_conv.1} parent=11 // pred_check
        %p124 = pneg %p31
      $region14: #{reverse_mask_conv.1} parent=11 // pred_check_branch
        %126 = sbr.rel (%p124) target = $region16
      $region15: #{reverse_mask_conv.1} parent=11 // pred_region
        _
      $region16: #{reverse_mask_conv.1} parent=11 // pred_fallthru
        _
    $region12: #{reverse_mask_conv.1} parent=5 // pred_fallthru
      _
    %p127 = scmp.lt.s32.totalorder %s10, 2
    // Predicated region
    $region17: #{reverse_mask_conv.1} parent=5 // pred_check
      %p128 = pneg %p127
    $region18: #{reverse_mask_conv.1} parent=5 // pred_check_branch
      %130 = sbr.rel (%p128) target = $region20
    $region19: #{reverse_mask_conv.1} parent=5 // pred_region
      // Predicated region
      $region21: #{reverse_mask_conv.1} parent=19 // pred_check
        %p131 = pneg %p51
      $region22: #{reverse_mask_conv.1} parent=19 // pred_check_branch
        %133 = sbr.rel (%p131) target = $region24
      $region23: #{reverse_mask_conv.1} parent=19 // pred_region
        %p134 = scmp.lt.s32.totalorder %s10, 1
        %s135 = scalar_select %p134, %s10, 1
        %s136 = smul.addr %s135, 4
        %s137 = smul.addr %s136, 2
        %s138 = scalar_lea.vmem %s1, %s137
      $region24: #{reverse_mask_conv.1} parent=19 // pred_fallthru
        _
    $region20: #{reverse_mask_conv.1} parent=5 // pred_fallthru
      _
    %p139 = scmp.le.s32.totalorder 1, %s10
    %p140 = scmp.lt.s32.totalorder %s10, 3
    %p141 = pnand %p139, %p140
    %p142 = pneg %p141
    // Predicated region
    $region25: #{reverse_mask_conv.1} parent=5 // pred_check
      _
    $region26: #{reverse_mask_conv.1} parent=5 // pred_check_branch
      %144 = sbr.rel (%p141) target = $region28
    $region27: #{reverse_mask_conv.1} parent=5 // pred_region
      %s145 = ssub.s32 %s10, 1
      %p146 = pneg %p31
      %p147 = pneg %p28
      %p148 = scmp.lt.s32.totalorder %s15, 1
      %s149 = scalar_select %p148, %s15, 1
      %s150 = smul.addr %s149, 4
      %s151 = smul.addr %s150, 2
      %s152 = scalar_lea.vmem %s1, %s151
      %p153 = pneg %p57
      %p154 = pneg %p54
      %p155 = pneg %p83
      %p156 = pneg %p80
      %p157 = scmp.lt.s32.totalorder %s15, 1
      %s158 = scalar_select %p157, %s15, 1
      %s159 = smul.addr %s158, 8
      %s160 = scalar_lea.vmem %s2, %s159
      %p161 = pneg %p109
      %p162 = pneg %p106
      %p163 = scmp.lt.s32.totalorder %s15, 1
      %s164 = scalar_select %p163, %s15, 1
      %s165 = smul.addr %s164, 8
      %s166 = scalar_lea.vmem %s3, %s165
      %p167 = scmp.lt.s32.totalorder %s15, 1
      %s168 = scalar_select %p167, %s15, 1
      %s169 = smul.addr %s168, 4
      %s170 = smul.addr %s169, 2
      %s171 = scalar_lea.vmem %s1, %s170
      %p172 = scmp.lt.s32.totalorder %s15, 1
      %s173 = scalar_select %p172, %s15, 1
      %s174 = smul.addr %s173, 8
      %s175 = scalar_lea.vmem %s2, %s174
      %p176 = scmp.lt.s32.totalorder %s15, 1
      %s177 = scalar_select %p176, %s15, 1
      %s178 = smul.addr %s177, 8
      %s179 = scalar_lea.vmem %s3, %s178
      %v181 = vld [vmem:[%s171] sm:$0x3]
      %v182 = vld [vmem:[%s0] sm:$0xf]
      %s183 = scalar_lea.vmem %s171, 2
      %v184 = vld [vmem:[%s183] sm:$0x3]
      %s185 = scalar_lea.vmem %s0, 4
      %v186 = vld [vmem:[%s185] sm:$0xf]
      %vm187 = vcmask 31744
      %v189 = vsel %vm187, %v186, 0
      %vm191 = vcmask 1041408
      %v193 = vsel %vm191, %v184, 0
      %195 = vmatprep.subr.bf16.mxu0 0
      %196 = vmatpush1.bf16.msra.mxu0 %v193
      %197 = vmatprep.subr.bf16.mxu0 0
      %198 = vmatpush1.bf16.msra.mxu0 0
      %199 = vmatprep.subr.bf16.mxu0 0
      %200 = vmatpush1.bf16.msra.mxu0 0
      %201 = vmatprep.subr.bf16.mxu0 0
      %202 = vmatpush1.bf16.msra.mxu0 0
      %203 = vmatprep.subr.bf16.mxu0 0
      %204 = vmatpush1.bf16.msra.mxu0 0
      %205 = vmatprep.subr.bf16.mxu0 0
      %206 = vmatpush1.bf16.msra.mxu0 0
      %207 = vmatprep.subr.bf16.mxu0 0
      %208 = vmatpush1.bf16.msra.mxu0 0
      %209 = vmatprep.subr.bf16.mxu0 0
      %210 = vmatpush1.bf16.msra.mxu0 0
      %211 = vmatprep.subr.bf16.mxu0 0
      %212 = vmatpush1.bf16.msra.mxu0 0
      %213 = vmatprep.subr.bf16.mxu0 0
      %214 = vmatpush1.bf16.msra.mxu0 0
      %215 = vmatprep.subr.bf16.mxu0 0
      %216 = vmatpush1.bf16.msra.mxu0 0
      %217 = vmatprep.subr.bf16.mxu0 0
      %218 = vmatpush1.bf16.msra.mxu0 0
      %219 = vmatprep.subr.bf16.mxu0 0
      %220 = vmatpush1.bf16.msra.mxu0 0
      %221 = vmatprep.subr.bf16.mxu0 0
      %222 = vmatpush1.bf16.msra.mxu0 0
      %223 = vmatprep.subr.bf16.mxu0 0
      %224 = vmatpush1.bf16.msra.mxu0 0
      %225 = vmatprep.subr.bf16.mxu0 0
      %226 = vmatpush1.bf16.msra.mxu0 0
      %227 = vmatprep.mubr.bf16.mxu0 0
      %228 = vmatmul.mubr.bf16.gmra.mrb[0].mxu0 %v189
      %v229 = vpop.f32.mrb[0].mxu0
      %v230 = vadd.f32 0.0, %v229
      %v231 = vpop.f32.mrb[0].mxu0
      %v232 = vpop.f32.mrb[0].mxu0
      %v233 = vpop.f32.mrb[0].mxu0
      %234 = vdwg.mxu0
      %v236 = vsel %vm187, %v182, 0
      %v239 = vsel %vm191, %v181, 0
      %241 = vmatprep.subr.bf16.mxu0 0
      %242 = vmatpush1.bf16.msra.mxu0 %v239
      %243 = vmatprep.subr.bf16.mxu0 0
      %244 = vmatpush1.bf16.msra.mxu0 0
      %245 = vmatprep.subr.bf16.mxu0 0
      %246 = vmatpush1.bf16.msra.mxu0 0
      %247 = vmatprep.subr.bf16.mxu0 0
      %248 = vmatpush1.bf16.msra.mxu0 0
      %249 = vmatprep.subr.bf16.mxu0 0
      %250 = vmatpush1.bf16.msra.mxu0 0
      %251 = vmatprep.subr.bf16.mxu0 0
      %252 = vmatpush1.bf16.msra.mxu0 0
      %253 = vmatprep.subr.bf16.mxu0 0
      %254 = vmatpush1.bf16.msra.mxu0 0
      %255 = vmatprep.subr.bf16.mxu0 0
      %256 = vmatpush1.bf16.msra.mxu0 0
      %257 = vmatprep.subr.bf16.mxu0 0
      %258 = vmatpush1.bf16.msra.mxu0 0
      %259 = vmatprep.subr.bf16.mxu0 0
      %260 = vmatpush1.bf16.msra.mxu0 0
      %261 = vmatprep.subr.bf16.mxu0 0
      %262 = vmatpush1.bf16.msra.mxu0 0
      %263 = vmatprep.subr.bf16.mxu0 0
      %264 = vmatpush1.bf16.msra.mxu0 0
      %265 = vmatprep.subr.bf16.mxu0 0
      %266 = vmatpush1.bf16.msra.mxu0 0
      %267 = vmatprep.subr.bf16.mxu0 0
      %268 = vmatpush1.bf16.msra.mxu0 0
      %269 = vmatprep.subr.bf16.mxu0 0
      %270 = vmatpush1.bf16.msra.mxu0 0
      %271 = vmatprep.subr.bf16.mxu0 0
      %272 = vmatpush1.bf16.msra.mxu0 0
      %273 = vmatprep.mubr.bf16.mxu0 0
      %274 = vmatmul.mubr.bf16.gmra.mrb[0].mxu0 %v236
      %v275 = vpop.f32.mrb[0].mxu0
      %v276 = vadd.f32 %v230, %v275
      %v277 = vpop.f32.mrb[0].mxu0
      %v278 = vpop.f32.mrb[0].mxu0
      %v279 = vpop.f32.mrb[0].mxu0
      %280 = vdwg.mxu0
      %s281 = scalar_lea.vmem %s0, 8
      %v282 = vld [vmem:[%s281] sm:$0xf]
      %v285 = vunpack.c.l.s4 1983009808
      %v286 = vunpack.c.0.s8 %v285
      %v287 = vlaneseq
      %v288 = vshrl.u32 %v287, 7
      %v289 = vsub.s32 %v286, %v288
      %v290 = vrot.slane %v181, %v289
      %291 = vrot.lane.b32.xlu0 %v290, 127
      %v292 = vpop.permute.xlu0 %291
      %v294 = vsel %vm187, %v282, 0
      %v297 = vsel %vm191, %v292, 0
      %299 = vmatprep.subr.bf16.mxu0 0
      %300 = vmatpush1.bf16.msra.mxu0 %v297
      %301 = vmatprep.subr.bf16.mxu0 0
      %302 = vmatpush1.bf16.msra.mxu0 0
      %303 = vmatprep.subr.bf16.mxu0 0
      %304 = vmatpush1.bf16.msra.mxu0 0
      %305 = vmatprep.subr.bf16.mxu0 0
      %306 = vmatpush1.bf16.msra.mxu0 0
      %307 = vmatprep.subr.bf16.mxu0 0
      %308 = vmatpush1.bf16.msra.mxu0 0
      %309 = vmatprep.subr.bf16.mxu0 0
      %310 = vmatpush1.bf16.msra.mxu0 0
      %311 = vmatprep.subr.bf16.mxu0 0
      %312 = vmatpush1.bf16.msra.mxu0 0
      %313 = vmatprep.subr.bf16.mxu0 0
      %314 = vmatpush1.bf16.msra.mxu0 0
      %315 = vmatprep.subr.bf16.mxu0 0
      %316 = vmatpush1.bf16.msra.mxu0 0
      %317 = vmatprep.subr.bf16.mxu0 0
      %318 = vmatpush1.bf16.msra.mxu0 0
      %319 = vmatprep.subr.bf16.mxu0 0
      %320 = vmatpush1.bf16.msra.mxu0 0
      %321 = vmatprep.subr.bf16.mxu0 0
      %322 = vmatpush1.bf16.msra.mxu0 0
      %323 = vmatprep.subr.bf16.mxu0 0
      %324 = vmatpush1.bf16.msra.mxu0 0
      %325 = vmatprep.subr.bf16.mxu0 0
      %326 = vmatpush1.bf16.msra.mxu0 0
      %327 = vmatprep.subr.bf16.mxu0 0
      %328 = vmatpush1.bf16.msra.mxu0 0
      %329 = vmatprep.subr.bf16.mxu0 0
      %330 = vmatpush1.bf16.msra.mxu0 0
      %331 = vmatprep.mubr.bf16.mxu0 0
      %332 = vmatmul.mubr.bf16.gmra.mrb[0].mxu0 %v294
      %v333 = vpop.f32.mrb[0].mxu0
      %v334 = vadd.f32 0.0, %v333
      %v335 = vpop.f32.mrb[0].mxu0
      %v336 = vpop.f32.mrb[0].mxu0
      %v337 = vpop.f32.mrb[0].mxu0
      %338 = vdwg.mxu0
      %v339 = vadd.f32 %v276, %v334
      %v340 = vld [vmem:[%s183] sm:$0x3]
      %s341 = scalar_lea.vmem %s0, 12
      %v342 = vld [vmem:[%s341] sm:$0xf]
      %v345 = vunpack.c.l.s4 1983009808
      %v346 = vunpack.c.0.s8 %v345
      %v347 = vlaneseq
      %v348 = vshrl.u32 %v347, 7
      %v349 = vsub.s32 %v346, %v348
      %v350 = vrot.slane %v340, %v349
      %351 = vrot.lane.b32.xlu0 %v350, 127
      %v352 = vpop.permute.xlu0 %351
      %v354 = vsel %vm187, %v342, 0
      %v357 = vsel %vm191, %v352, 0
      %359 = vmatprep.subr.bf16.mxu0 0
      %360 = vmatpush1.bf16.msra.mxu0 %v357
      %361 = vmatprep.subr.bf16.mxu0 0
      %362 = vmatpush1.bf16.msra.mxu0 0
      %363 = vmatprep.subr.bf16.mxu0 0
      %364 = vmatpush1.bf16.msra.mxu0 0
      %365 = vmatprep.subr.bf16.mxu0 0
      %366 = vmatpush1.bf16.msra.mxu0 0
      %367 = vmatprep.subr.bf16.mxu0 0
      %368 = vmatpush1.bf16.msra.mxu0 0
      %369 = vmatprep.subr.bf16.mxu0 0
      %370 = vmatpush1.bf16.msra.mxu0 0
      %371 = vmatprep.subr.bf16.mxu0 0
      %372 = vmatpush1.bf16.msra.mxu0 0
      %373 = vmatprep.subr.bf16.mxu0 0
      %374 = vmatpush1.bf16.msra.mxu0 0
      %375 = vmatprep.subr.bf16.mxu0 0
      %376 = vmatpush1.bf16.msra.mxu0 0
      %377 = vmatprep.subr.bf16.mxu0 0
      %378 = vmatpush1.bf16.msra.mxu0 0
      %379 = vmatprep.subr.bf16.mxu0 0
      %380 = vmatpush1.bf16.msra.mxu0 0
      %381 = vmatprep.subr.bf16.mxu0 0
      %382 = vmatpush1.bf16.msra.mxu0 0
      %383 = vmatprep.subr.bf16.mxu0 0
      %384 = vmatpush1.bf16.msra.mxu0 0
      %385 = vmatprep.subr.bf16.mxu0 0
      %386 = vmatpush1.bf16.msra.mxu0 0
      %387 = vmatprep.subr.bf16.mxu0 0
      %388 = vmatpush1.bf16.msra.mxu0 0
      %389 = vmatprep.subr.bf16.mxu0 0
      %390 = vmatpush1.bf16.msra.mxu0 0
      %391 = vmatprep.mubr.bf16.mxu0 0
      %392 = vmatmul.mubr.bf16.gmra.mrb[0].mxu0 %v354
      %v393 = vpop.f32.mrb[0].mxu0
      %v394 = vadd.f32 0.0, %v393
      %v395 = vpop.f32.mrb[0].mxu0
      %v396 = vpop.f32.mrb[0].mxu0
      %v397 = vpop.f32.mrb[0].mxu0
      %398 = vdwg.mxu0
      %v399 = vadd.f32 %v339, %v394
      %s400 = scalar_lea.vmem %s171, 4
      %v401 = vld [vmem:[%s400] sm:$0x3]
      %s402 = scalar_lea.vmem %s0, 16
      %v403 = vld [vmem:[%s402] sm:$0xf]
      %v405 = vsel %vm187, %v403, 0
      %v408 = vsel %vm191, %v401, 0
      %410 = vmatprep.subr.bf16.mxu0 0
      %411 = vmatpush1.bf16.msra.mxu0 %v408
      %412 = vmatprep.subr.bf16.mxu0 0
      %413 = vmatpush1.bf16.msra.mxu0 0
      %414 = vmatprep.subr.bf16.mxu0 0
      %415 = vmatpush1.bf16.msra.mxu0 0
      %416 = vmatprep.subr.bf16.mxu0 0
      %417 = vmatpush1.bf16.msra.mxu0 0
      %418 = vmatprep.subr.bf16.mxu0 0
      %419 = vmatpush1.bf16.msra.mxu0 0
      %420 = vmatprep.subr.bf16.mxu0 0
      %421 = vmatpush1.bf16.msra.mxu0 0
      %422 = vmatprep.subr.bf16.mxu0 0
      %423 = vmatpush1.bf16.msra.mxu0 0
      %424 = vmatprep.subr.bf16.mxu0 0
      %425 = vmatpush1.bf16.msra.mxu0 0
      %426 = vmatprep.subr.bf16.mxu0 0
      %427 = vmatpush1.bf16.msra.mxu0 0
      %428 = vmatprep.subr.bf16.mxu0 0
      %429 = vmatpush1.bf16.msra.mxu0 0
      %430 = vmatprep.subr.bf16.mxu0 0
      %431 = vmatpush1.bf16.msra.mxu0 0
      %432 = vmatprep.subr.bf16.mxu0 0
      %433 = vmatpush1.bf16.msra.mxu0 0
      %434 = vmatprep.subr.bf16.mxu0 0
      %435 = vmatpush1.bf16.msra.mxu0 0
      %436 = vmatprep.subr.bf16.mxu0 0
      %437 = vmatpush1.bf16.msra.mxu0 0
      %438 = vmatprep.subr.bf16.mxu0 0
      %439 = vmatpush1.bf16.msra.mxu0 0
      %440 = vmatprep.subr.bf16.mxu0 0
      %441 = vmatpush1.bf16.msra.mxu0 0
      %442 = vmatprep.mubr.bf16.mxu0 0
      %443 = vmatmul.mubr.bf16.gmra.mrb[0].mxu0 %v405
      %v444 = vpop.f32.mrb[0].mxu0
      %v445 = vadd.f32 0.0, %v444
      %v446 = vpop.f32.mrb[0].mxu0
      %v447 = vpop.f32.mrb[0].mxu0
      %v448 = vpop.f32.mrb[0].mxu0
      %449 = vdwg.mxu0
      %v450 = vadd.f32 %v399, %v445
      %s451 = scalar_lea.vmem %s171, 6
      %v452 = vld [vmem:[%s451] sm:$0x3]
      %s453 = scalar_lea.vmem %s0, 20
      %v454 = vld [vmem:[%s453] sm:$0xf]
      %v456 = vsel %vm187, %v454, 0
      %v459 = vsel %vm191, %v452, 0
      %461 = vmatprep.subr.bf16.mxu0 0
      %462 = vmatpush1.bf16.msra.mxu0 %v459
      %463 = vmatprep.subr.bf16.mxu0 0
      %464 = vmatpush1.bf16.msra.mxu0 0
      %465 = vmatprep.subr.bf16.mxu0 0
      %466 = vmatpush1.bf16.msra.mxu0 0
      %467 = vmatprep.subr.bf16.mxu0 0
      %468 = vmatpush1.bf16.msra.mxu0 0
      %469 = vmatprep.subr.bf16.mxu0 0
      %470 = vmatpush1.bf16.msra.mxu0 0
      %471 = vmatprep.subr.bf16.mxu0 0
      %472 = vmatpush1.bf16.msra.mxu0 0
      %473 = vmatprep.subr.bf16.mxu0 0
      %474 = vmatpush1.bf16.msra.mxu0 0
      %475 = vmatprep.subr.bf16.mxu0 0
      %476 = vmatpush1.bf16.msra.mxu0 0
      %477 = vmatprep.subr.bf16.mxu0 0
      %478 = vmatpush1.bf16.msra.mxu0 0
      %479 = vmatprep.subr.bf16.mxu0 0
      %480 = vmatpush1.bf16.msra.mxu0 0
      %481 = vmatprep.subr.bf16.mxu0 0
      %482 = vmatpush1.bf16.msra.mxu0 0
      %483 = vmatprep.subr.bf16.mxu0 0
      %484 = vmatpush1.bf16.msra.mxu0 0
      %485 = vmatprep.subr.bf16.mxu0 0
      %486 = vmatpush1.bf16.msra.mxu0 0
      %487 = vmatprep.subr.bf16.mxu0 0
      %488 = vmatpush1.bf16.msra.mxu0 0
      %489 = vmatprep.subr.bf16.mxu0 0
      %490 = vmatpush1.bf16.msra.mxu0 0
      %491 = vmatprep.subr.bf16.mxu0 0
      %492 = vmatpush1.bf16.msra.mxu0 0
      %493 = vmatprep.mubr.bf16.mxu0 0
      %494 = vmatmul.mubr.bf16.gmra.mrb[0].mxu0 %v456
      %v495 = vpop.f32.mrb[0].mxu0
      %v496 = vadd.f32 0.0, %v495
      %v497 = vpop.f32.mrb[0].mxu0
      %v498 = vpop.f32.mrb[0].mxu0
      %v499 = vpop.f32.mrb[0].mxu0
      %500 = vdwg.mxu0
      %v501 = vadd.f32 %v450, %v496
      %s502 = scalar_lea.vmem %s0, 24
      %v503 = vld [vmem:[%s502] sm:$0xf]
      %v506 = vunpack.c.l.s4 1983009808
      %v507 = vunpack.c.0.s8 %v506
      %v508 = vlaneseq
      %v509 = vshrl.u32 %v508, 7
      %v510 = vsub.s32 %v507, %v509
      %v511 = vrot.slane %v401, %v510
      %512 = vrot.lane.b32.xlu0 %v511, 127
      %v513 = vpop.permute.xlu0 %512
      %v515 = vsel %vm187, %v503, 0
      %v518 = vsel %vm191, %v513, 0
      %520 = vmatprep.subr.bf16.mxu0 0
      %521 = vmatpush1.bf16.msra.mxu0 %v518
      %522 = vmatprep.subr.bf16.mxu0 0
      %523 = vmatpush1.bf16.msra.mxu0 0
      %524 = vmatprep.subr.bf16.mxu0 0
      %525 = vmatpush1.bf16.msra.mxu0 0
      %526 = vmatprep.subr.bf16.mxu0 0
      %527 = vmatpush1.bf16.msra.mxu0 0
      %528 = vmatprep.subr.bf16.mxu0 0
      %529 = vmatpush1.bf16.msra.mxu0 0
      %530 = vmatprep.subr.bf16.mxu0 0
      %531 = vmatpush1.bf16.msra.mxu0 0
      %532 = vmatprep.subr.bf16.mxu0 0
      %533 = vmatpush1.bf16.msra.mxu0 0
      %534 = vmatprep.subr.bf16.mxu0 0
      %535 = vmatpush1.bf16.msra.mxu0 0
      %536 = vmatprep.subr.bf16.mxu0 0
      %537 = vmatpush1.bf16.msra.mxu0 0
      %538 = vmatprep.subr.bf16.mxu0 0
      %539 = vmatpush1.bf16.msra.mxu0 0
      %540 = vmatprep.subr.bf16.mxu0 0
      %541 = vmatpush1.bf16.msra.mxu0 0
      %542 = vmatprep.subr.bf16.mxu0 0
      %543 = vmatpush1.bf16.msra.mxu0 0
      %544 = vmatprep.subr.bf16.mxu0 0
      %545 = vmatpush1.bf16.msra.mxu0 0
      %546 = vmatprep.subr.bf16.mxu0 0
      %547 = vmatpush1.bf16.msra.mxu0 0
      %548 = vmatprep.subr.bf16.mxu0 0
      %549 = vmatpush1.bf16.msra.mxu0 0
      %550 = vmatprep.subr.bf16.mxu0 0
      %551 = vmatpush1.bf16.msra.mxu0 0
      %552 = vmatprep.mubr.bf16.mxu0 0
      %553 = vmatmul.mubr.bf16.gmra.mrb[0].mxu0 %v515
      %v554 = vpop.f32.mrb[0].mxu0
      %v555 = vadd.f32 0.0, %v554
      %v556 = vpop.f32.mrb[0].mxu0
      %v557 = vpop.f32.mrb[0].mxu0
      %v558 = vpop.f32.mrb[0].mxu0
      %559 = vdwg.mxu0
      %v560 = vadd.f32 %v501, %v555
      %v561 = vld [vmem:[%s451] sm:$0x3]
      %s562 = scalar_lea.vmem %s0, 28
      %v563 = vld [vmem:[%s562] sm:$0xf]
      %v566 = vunpack.c.l.s4 1983009808
      %v567 = vunpack.c.0.s8 %v566
      %v568 = vlaneseq
      %v569 = vshrl.u32 %v568, 7
      %v570 = vsub.s32 %v567, %v569
      %v571 = vrot.slane %v561, %v570
      %572 = vrot.lane.b32.xlu0 %v571, 127
      %v573 = vpop.permute.xlu0 %572
      %v575 = vsel %vm187, %v563, 0
      %v578 = vsel %vm191, %v573, 0
      %580 = vmatprep.subr.bf16.mxu0 0
      %581 = vmatpush1.bf16.msra.mxu0 %v578
      %582 = vmatprep.subr.bf16.mxu0 0
      %583 = vmatpush1.bf16.msra.mxu0 0
      %584 = vmatprep.subr.bf16.mxu0 0
      %585 = vmatpush1.bf16.msra.mxu0 0
      %586 = vmatprep.subr.bf16.mxu0 0
      %587 = vmatpush1.bf16.msra.mxu0 0
      %588 = vmatprep.subr.bf16.mxu0 0
      %589 = vmatpush1.bf16.msra.mxu0 0
      %590 = vmatprep.subr.bf16.mxu0 0
      %591 = vmatpush1.bf16.msra.mxu0 0
      %592 = vmatprep.subr.bf16.mxu0 0
      %593 = vmatpush1.bf16.msra.mxu0 0
      %594 = vmatprep.subr.bf16.mxu0 0
      %595 = vmatpush1.bf16.msra.mxu0 0
      %596 = vmatprep.subr.bf16.mxu0 0
      %597 = vmatpush1.bf16.msra.mxu0 0
      %598 = vmatprep.subr.bf16.mxu0 0
      %599 = vmatpush1.bf16.msra.mxu0 0
      %600 = vmatprep.subr.bf16.mxu0 0
      %601 = vmatpush1.bf16.msra.mxu0 0
      %602 = vmatprep.subr.bf16.mxu0 0
      %603 = vmatpush1.bf16.msra.mxu0 0
      %604 = vmatprep.subr.bf16.mxu0 0
      %605 = vmatpush1.bf16.msra.mxu0 0
      %606 = vmatprep.subr.bf16.mxu0 0
      %607 = vmatpush1.bf16.msra.mxu0 0
      %608 = vmatprep.subr.bf16.mxu0 0
      %609 = vmatpush1.bf16.msra.mxu0 0
      %610 = vmatprep.subr.bf16.mxu0 0
      %611 = vmatpush1.bf16.msra.mxu0 0
      %612 = vmatprep.mubr.bf16.mxu0 0
      %613 = vmatmul.mubr.bf16.gmra.mrb[0].mxu0 %v575
      %v614 = vpop.f32.mrb[0].mxu0
      %v615 = vadd.f32 0.0, %v614
      %v616 = vpop.f32.mrb[0].mxu0
      %v617 = vpop.f32.mrb[0].mxu0
      %v618 = vpop.f32.mrb[0].mxu0
      %619 = vdwg.mxu0
      %v620 = vadd.f32 %v560, %v615
      %v621 = vld [vmem:[%s171] sm:$0x3]
      %s622 = scalar_lea.vmem %s0, 32
      %v623 = vld [vmem:[%s622] sm:$0xf]
      %v626 = vunpack.c.l.s4 1983009808
      %v627 = vunpack.c.0.s8 %v626
      %v628 = vlaneseq
      %v629 = vshrl.u32 %v628, 7
      %v630 = vsub.s32 %v627, %v629
      %v631 = vrot.slane %v621, %v630
      %632 = vrot.lane.b32.xlu0 %v631, 119
      %v633 = vpop.permute.xlu0 %632
      %v635 = vsel %vm187, %v623, 0
      %v638 = vsel %vm191, %v633, 0
      %640 = vmatprep.subr.bf16.mxu0 0
      %641 = vmatpush1.bf16.msra.mxu0 %v638
      %642 = vmatprep.subr.bf16.mxu0 0
      %643 = vmatpush1.bf16.msra.mxu0 0
      %644 = vmatprep.subr.bf16.mxu0 0
      %645 = vmatpush1.bf16.msra.mxu0 0
      %646 = vmatprep.subr.bf16.mxu0 0
      %647 = vmatpush1.bf16.msra.mxu0 0
      %648 = vmatprep.subr.bf16.mxu0 0
      %649 = vmatpush1.bf16.msra.mxu0 0
      %650 = vmatprep.subr.bf16.mxu0 0
      %651 = vmatpush1.bf16.msra.mxu0 0
      %652 = vmatprep.subr.bf16.mxu0 0
      %653 = vmatpush1.bf16.msra.mxu0 0
      %654 = vmatprep.subr.bf16.mxu0 0
      %655 = vmatpush1.bf16.msra.mxu0 0
      %656 = vmatprep.subr.bf16.mxu0 0
      %657 = vmatpush1.bf16.msra.mxu0 0
      %658 = vmatprep.subr.bf16.mxu0 0
      %659 = vmatpush1.bf16.msra.mxu0 0
      %660 = vmatprep.subr.bf16.mxu0 0
      %661 = vmatpush1.bf16.msra.mxu0 0
      %662 = vmatprep.subr.bf16.mxu0 0
      %663 = vmatpush1.bf16.msra.mxu0 0
      %664 = vmatprep.subr.bf16.mxu0 0
      %665 = vmatpush1.bf16.msra.mxu0 0
      %666 = vmatprep.subr.bf16.mxu0 0
      %667 = vmatpush1.bf16.msra.mxu0 0
      %668 = vmatprep.subr.bf16.mxu0 0
      %669 = vmatpush1.bf16.msra.mxu0 0
      %670 = vmatprep.subr.bf16.mxu0 0
      %671 = vmatpush1.bf16.msra.mxu0 0
      %672 = vmatprep.mubr.bf16.mxu0 0
      %673 = vmatmul.mubr.bf16.gmra.mrb[0].mxu0 %v635
      %v674 = vpop.f32.mrb[0].mxu0
      %v675 = vadd.f32 0.0, %v674
      %v676 = vpop.f32.mrb[0].mxu0
      %v677 = vpop.f32.mrb[0].mxu0
      %v678 = vpop.f32.mrb[0].mxu0
      %679 = vdwg.mxu0
      %v680 = vadd.f32 %v620, %v675
      %v681 = vld [vmem:[%s183] sm:$0x3]
      %s682 = scalar_lea.vmem %s0, 36
      %v683 = vld [vmem:[%s682] sm:$0xf]
      %v686 = vunpack.c.l.s4 1983009808
      %v687 = vunpack.c.0.s8 %v686
      %v688 = vlaneseq
      %v689 = vshrl.u32 %v688, 7
      %v690 = vsub.s32 %v687, %v689
      %v691 = vrot.slane %v681, %v690
      %692 = vrot.lane.b32.xlu0 %v691, 119
      %v693 = vpop.permute.xlu0 %692
      %v695 = vsel %vm187, %v683, 0
      %v698 = vsel %vm191, %v693, 0
      %700 = vmatprep.subr.bf16.mxu0 0
      %701 = vmatpush1.bf16.msra.mxu0 %v698
      %702 = vmatprep.subr.bf16.mxu0 0
      %703 = vmatpush1.bf16.msra.mxu0 0
      %704 = vmatprep.subr.bf16.mxu0 0
      %705 = vmatpush1.bf16.msra.mxu0 0
      %706 = vmatprep.subr.bf16.mxu0 0
      %707 = vmatpush1.bf16.msra.mxu0 0
      %708 = vmatprep.subr.bf16.mxu0 0
      %709 = vmatpush1.bf16.msra.mxu0 0
      %710 = vmatprep.subr.bf16.mxu0 0
      %711 = vmatpush1.bf16.msra.mxu0 0
      %712 = vmatprep.subr.bf16.mxu0 0
      %713 = vmatpush1.bf16.msra.mxu0 0
      %714 = vmatprep.subr.bf16.mxu0 0
      %715 = vmatpush1.bf16.msra.mxu0 0
      %716 = vmatprep.subr.bf16.mxu0 0
      %717 = vmatpush1.bf16.msra.mxu0 0
      %718 = vmatprep.subr.bf16.mxu0 0
      %719 = vmatpush1.bf16.msra.mxu0 0
      %720 = vmatprep.subr.bf16.mxu0 0
      %721 = vmatpush1.bf16.msra.mxu0 0
      %722 = vmatprep.subr.bf16.mxu0 0
      %723 = vmatpush1.bf16.msra.mxu0 0
      %724 = vmatprep.subr.bf16.mxu0 0
      %725 = vmatpush1.bf16.msra.mxu0 0
      %726 = vmatprep.subr.bf16.mxu0 0
      %727 = vmatpush1.bf16.msra.mxu0 0
      %728 = vmatprep.subr.bf16.mxu0 0
      %729 = vmatpush1.bf16.msra.mxu0 0
      %730 = vmatprep.subr.bf16.mxu0 0
      %731 = vmatpush1.bf16.msra.mxu0 0
      %732 = vmatprep.mubr.bf16.mxu0 0
      %733 = vmatmul.mubr.bf16.gmra.mrb[0].mxu0 %v695
      %v734 = vpop.f32.mrb[0].mxu0
      %v735 = vadd.f32 0.0, %v734
      %v736 = vpop.f32.mrb[0].mxu0
      %v737 = vpop.f32.mrb[0].mxu0
      %v738 = vpop.f32.mrb[0].mxu0
      %739 = vdwg.mxu0
      %v740 = vadd.f32 %v680, %v735
      %v741 = vld [vmem:[%s171] sm:$0x3]
      %s742 = scalar_lea.vmem %s0, 40
      %v743 = vld [vmem:[%s742] sm:$0xf]
      %v746 = vunpack.c.l.s4 1983009808
      %v747 = vunpack.c.0.s8 %v746
      %v748 = vlaneseq
      %v749 = vshrl.u32 %v748, 7
      %v750 = vsub.s32 %v747, %v749
      %v751 = vrot.slane %v741, %v750
      %752 = vrot.lane.b32.xlu0 %v751, 118
      %v753 = vpop.permute.xlu0 %752
      %v755 = vsel %vm187, %v743, 0
      %v758 = vsel %vm191, %v753, 0
      %760 = vmatprep.subr.bf16.mxu0 0
      %761 = vmatpush1.bf16.msra.mxu0 %v758
      %762 = vmatprep.subr.bf16.mxu0 0
      %763 = vmatpush1.bf16.msra.mxu0 0
      %764 = vmatprep.subr.bf16.mxu0 0
      %765 = vmatpush1.bf16.msra.mxu0 0
      %766 = vmatprep.subr.bf16.mxu0 0
      %767 = vmatpush1.bf16.msra.mxu0 0
      %768 = vmatprep.subr.bf16.mxu0 0
      %769 = vmatpush1.bf16.msra.mxu0 0
      %770 = vmatprep.subr.bf16.mxu0 0
      %771 = vmatpush1.bf16.msra.mxu0 0
      %772 = vmatprep.subr.bf16.mxu0 0
      %773 = vmatpush1.bf16.msra.mxu0 0
      %774 = vmatprep.subr.bf16.mxu0 0
      %775 = vmatpush1.bf16.msra.mxu0 0
      %776 = vmatprep.subr.bf16.mxu0 0
      %777 = vmatpush1.bf16.msra.mxu0 0
      %778 = vmatprep.subr.bf16.mxu0 0
      %779 = vmatpush1.bf16.msra.mxu0 0
      %780 = vmatprep.subr.bf16.mxu0 0
      %781 = vmatpush1.bf16.msra.mxu0 0
      %782 = vmatprep.subr.bf16.mxu0 0
      %783 = vmatpush1.bf16.msra.mxu0 0
      %784 = vmatprep.subr.bf16.mxu0 0
      %785 = vmatpush1.bf16.msra.mxu0 0
      %786 = vmatprep.subr.bf16.mxu0 0
      %787 = vmatpush1.bf16.msra.mxu0 0
      %788 = vmatprep.subr.bf16.mxu0 0
      %789 = vmatpush1.bf16.msra.mxu0 0
      %790 = vmatprep.subr.bf16.mxu0 0
      %791 = vmatpush1.bf16.msra.mxu0 0
      %792 = vmatprep.mubr.bf16.mxu0 0
      %793 = vmatmul.mubr.bf16.gmra.mrb[0].mxu0 %v755
      %v794 = vpop.f32.mrb[0].mxu0
      %v795 = vadd.f32 0.0, %v794
      %v796 = vpop.f32.mrb[0].mxu0
      %v797 = vpop.f32.mrb[0].mxu0
      %v798 = vpop.f32.mrb[0].mxu0
      %799 = vdwg.mxu0
      %v800 = vadd.f32 %v740, %v795
      %v801 = vld [vmem:[%s183] sm:$0x3]
      %s802 = scalar_lea.vmem %s0, 44
      %v803 = vld [vmem:[%s802] sm:$0xf]
      %v806 = vunpack.c.l.s4 1983009808
      %v807 = vunpack.c.0.s8 %v806
      %v808 = vlaneseq
      %v809 = vshrl.u32 %v808, 7
      %v810 = vsub.s32 %v807, %v809
      %v811 = vrot.slane %v801, %v810
      %812 = vrot.lane.b32.xlu0 %v811, 118
      %v813 = vpop.permute.xlu0 %812
      %v815 = vsel %vm187, %v803, 0
      %v818 = vsel %vm191, %v813, 0
      %820 = vmatprep.subr.bf16.mxu0 0
      %821 = vmatpush1.bf16.msra.mxu0 %v818
      %822 = vmatprep.subr.bf16.mxu0 0
      %823 = vmatpush1.bf16.msra.mxu0 0
      %824 = vmatprep.subr.bf16.mxu0 0
      %825 = vmatpush1.bf16.msra.mxu0 0
      %826 = vmatprep.subr.bf16.mxu0 0
      %827 = vmatpush1.bf16.msra.mxu0 0
      %828 = vmatprep.subr.bf16.mxu0 0
      %829 = vmatpush1.bf16.msra.mxu0 0
      %830 = vmatprep.subr.bf16.mxu0 0
      %831 = vmatpush1.bf16.msra.mxu0 0
      %832 = vmatprep.subr.bf16.mxu0 0
      %833 = vmatpush1.bf16.msra.mxu0 0
      %834 = vmatprep.subr.bf16.mxu0 0
      %835 = vmatpush1.bf16.msra.mxu0 0
      %836 = vmatprep.subr.bf16.mxu0 0
      %837 = vmatpush1.bf16.msra.mxu0 0
      %838 = vmatprep.subr.bf16.mxu0 0
      %839 = vmatpush1.bf16.msra.mxu0 0
      %840 = vmatprep.subr.bf16.mxu0 0
      %841 = vmatpush1.bf16.msra.mxu0 0
      %842 = vmatprep.subr.bf16.mxu0 0
      %843 = vmatpush1.bf16.msra.mxu0 0
      %844 = vmatprep.subr.bf16.mxu0 0
      %845 = vmatpush1.bf16.msra.mxu0 0
      %846 = vmatprep.subr.bf16.mxu0 0
      %847 = vmatpush1.bf16.msra.mxu0 0
      %848 = vmatprep.subr.bf16.mxu0 0
      %849 = vmatpush1.bf16.msra.mxu0 0
      %850 = vmatprep.subr.bf16.mxu0 0
      %851 = vmatpush1.bf16.msra.mxu0 0
      %852 = vmatprep.mubr.bf16.mxu0 0
      %853 = vmatmul.mubr.bf16.gmra.mrb[0].mxu0 %v815
      %v854 = vpop.f32.mrb[0].mxu0
      %v855 = vadd.f32 0.0, %v854
      %v856 = vpop.f32.mrb[0].mxu0
      %v857 = vpop.f32.mrb[0].mxu0
      %v858 = vpop.f32.mrb[0].mxu0
      %859 = vdwg.mxu0
      %v860 = vadd.f32 %v800, %v855
      %v861 = vld [vmem:[%s400] sm:$0x3]
      %s862 = scalar_lea.vmem %s0, 48
      %v863 = vld [vmem:[%s862] sm:$0xf]
      %v866 = vunpack.c.l.s4 1983009808
      %v867 = vunpack.c.0.s8 %v866
      %v868 = vlaneseq
      %v869 = vshrl.u32 %v868, 7
      %v870 = vsub.s32 %v867, %v869
      %v871 = vrot.slane %v861, %v870
      %872 = vrot.lane.b32.xlu0 %v871, 119
      %v873 = vpop.permute.xlu0 %872
      %v875 = vsel %vm187, %v863, 0
      %v878 = vsel %vm191, %v873, 0
      %880 = vmatprep.subr.bf16.mxu0 0
      %881 = vmatpush1.bf16.msra.mxu0 %v878
      %882 = vmatprep.subr.bf16.mxu0 0
      %883 = vmatpush1.bf16.msra.mxu0 0
      %884 = vmatprep.subr.bf16.mxu0 0
      %885 = vmatpush1.bf16.msra.mxu0 0
      %886 = vmatprep.subr.bf16.mxu0 0
      %887 = vmatpush1.bf16.msra.mxu0 0
      %888 = vmatprep.subr.bf16.mxu0 0
      %889 = vmatpush1.bf16.msra.mxu0 0
      %890 = vmatprep.subr.bf16.mxu0 0
      %891 = vmatpush1.bf16.msra.mxu0 0
      %892 = vmatprep.subr.bf16.mxu0 0
      %893 = vmatpush1.bf16.msra.mxu0 0
      %894 = vmatprep.subr.bf16.mxu0 0
      %895 = vmatpush1.bf16.msra.mxu0 0
      %896 = vmatprep.subr.bf16.mxu0 0
      %897 = vmatpush1.bf16.msra.mxu0 0
      %898 = vmatprep.subr.bf16.mxu0 0
      %899 = vmatpush1.bf16.msra.mxu0 0
      %900 = vmatprep.subr.bf16.mxu0 0
      %901 = vmatpush1.bf16.msra.mxu0 0
      %902 = vmatprep.subr.bf16.mxu0 0
      %903 = vmatpush1.bf16.msra.mxu0 0
      %904 = vmatprep.subr.bf16.mxu0 0
      %905 = vmatpush1.bf16.msra.mxu0 0
      %906 = vmatprep.subr.bf16.mxu0 0
      %907 = vmatpush1.bf16.msra.mxu0 0
      %908 = vmatprep.subr.bf16.mxu0 0
      %909 = vmatpush1.bf16.msra.mxu0 0
      %910 = vmatprep.subr.bf16.mxu0 0
      %911 = vmatpush1.bf16.msra.mxu0 0
      %912 = vmatprep.mubr.bf16.mxu0 0
      %913 = vmatmul.mubr.bf16.gmra.mrb[0].mxu0 %v875
      %v914 = vpop.f32.mrb[0].mxu0
      %v915 = vadd.f32 0.0, %v914
      %v916 = vpop.f32.mrb[0].mxu0
      %v917 = vpop.f32.mrb[0].mxu0
      %v918 = vpop.f32.mrb[0].mxu0
      %919 = vdwg.mxu0
      %v920 = vadd.f32 %v860, %v915
      %v921 = vld [vmem:[%s451] sm:$0x3]
      %s922 = scalar_lea.vmem %s0, 52
      %v923 = vld [vmem:[%s922] sm:$0xf]
      %v926 = vunpack.c.l.s4 1983009808
      %v927 = vunpack.c.0.s8 %v926
      %v928 = vlaneseq
      %v929 = vshrl.u32 %v928, 7
      %v930 = vsub.s32 %v927, %v929
      %v931 = vrot.slane %v921, %v930
      %932 = vrot.lane.b32.xlu0 %v931, 119
      %v933 = vpop.permute.xlu0 %932
      %v935 = vsel %vm187, %v923, 0
      %v938 = vsel %vm191, %v933, 0
      %940 = vmatprep.subr.bf16.mxu0 0
      %941 = vmatpush1.bf16.msra.mxu0 %v938
      %942 = vmatprep.subr.bf16.mxu0 0
      %943 = vmatpush1.bf16.msra.mxu0 0
      %944 = vmatprep.subr.bf16.mxu0 0
      %945 = vmatpush1.bf16.msra.mxu0 0
      %946 = vmatprep.subr.bf16.mxu0 0
      %947 = vmatpush1.bf16.msra.mxu0 0
      %948 = vmatprep.subr.bf16.mxu0 0
      %949 = vmatpush1.bf16.msra.mxu0 0
      %950 = vmatprep.subr.bf16.mxu0 0
      %951 = vmatpush1.bf16.msra.mxu0 0
      %952 = vmatprep.subr.bf16.mxu0 0
      %953 = vmatpush1.bf16.msra.mxu0 0
      %954 = vmatprep.subr.bf16.mxu0 0
      %955 = vmatpush1.bf16.msra.mxu0 0
      %956 = vmatprep.subr.bf16.mxu0 0
      %957 = vmatpush1.bf16.msra.mxu0 0
      %958 = vmatprep.subr.bf16.mxu0 0
      %959 = vmatpush1.bf16.msra.mxu0 0
      %960 = vmatprep.subr.bf16.mxu0 0
      %961 = vmatpush1.bf16.msra.mxu0 0
      %962 = vmatprep.subr.bf16.mxu0 0
      %963 = vmatpush1.bf16.msra.mxu0 0
      %964 = vmatprep.subr.bf16.mxu0 0
      %965 = vmatpush1.bf16.msra.mxu0 0
      %966 = vmatprep.subr.bf16.mxu0 0
      %967 = vmatpush1.bf16.msra.mxu0 0
      %968 = vmatprep.subr.bf16.mxu0 0
      %969 = vmatpush1.bf16.msra.mxu0 0
      %970 = vmatprep.subr.bf16.mxu0 0
      %971 = vmatpush1.bf16.msra.mxu0 0
      %972 = vmatprep.mubr.bf16.mxu0 0
      %973 = vmatmul.mubr.bf16.gmra.mrb[0].mxu0 %v935
      %v974 = vpop.f32.mrb[0].mxu0
      %v975 = vadd.f32 0.0, %v974
      %v976 = vpop.f32.mrb[0].mxu0
      %v977 = vpop.f32.mrb[0].mxu0
      %v978 = vpop.f32.mrb[0].mxu0
      %979 = vdwg.mxu0
      %v980 = vadd.f32 %v920, %v975
      %v981 = vld [vmem:[%s400] sm:$0x3]
      %s982 = scalar_lea.vmem %s0, 56
      %v983 = vld [vmem:[%s982] sm:$0xf]
      %v986 = vunpack.c.l.s4 1983009808
      %v987 = vunpack.c.0.s8 %v986
      %v988 = vlaneseq
      %v989 = vshrl.u32 %v988, 7
      %v990 = vsub.s32 %v987, %v989
      %v991 = vrot.slane %v981, %v990
      %992 = vrot.lane.b32.xlu0 %v991, 118
      %v993 = vpop.permute.xlu0 %992
      %v995 = vsel %vm187, %v983, 0
      %v998 = vsel %vm191, %v993, 0
      %1000 = vmatprep.subr.bf16.mxu0 0
      %1001 = vmatpush1.bf16.msra.mxu0 %v998
      %1002 = vmatprep.subr.bf16.mxu0 0
      %1003 = vmatpush1.bf16.msra.mxu0 0
      %1004 = vmatprep.subr.bf16.mxu0 0
      %1005 = vmatpush1.bf16.msra.mxu0 0
      %1006 = vmatprep.subr.bf16.mxu0 0
      %1007 = vmatpush1.bf16.msra.mxu0 0
      %1008 = vmatprep.subr.bf16.mxu0 0
      %1009 = vmatpush1.bf16.msra.mxu0 0
      %1010 = vmatprep.subr.bf16.mxu0 0
      %1011 = vmatpush1.bf16.msra.mxu0 0
      %1012 = vmatprep.subr.bf16.mxu0 0
      %1013 = vmatpush1.bf16.msra.mxu0 0
      %1014 = vmatprep.subr.bf16.mxu0 0
      %1015 = vmatpush1.bf16.msra.mxu0 0
      %1016 = vmatprep.subr.bf16.mxu0 0
      %1017 = vmatpush1.bf16.msra.mxu0 0
      %1018 = vmatprep.subr.bf16.mxu0 0
      %1019 = vmatpush1.bf16.msra.mxu0 0
      %1020 = vmatprep.subr.bf16.mxu0 0
      %1021 = vmatpush1.bf16.msra.mxu0 0
      %1022 = vmatprep.subr.bf16.mxu0 0
      %1023 = vmatpush1.bf16.msra.mxu0 0
      %1024 = vmatprep.subr.bf16.mxu0 0
      %1025 = vmatpush1.bf16.msra.mxu0 0
      %1026 = vmatprep.subr.bf16.mxu0 0
      %1027 = vmatpush1.bf16.msra.mxu0 0
      %1028 = vmatprep.subr.bf16.mxu0 0
      %1029 = vmatpush1.bf16.msra.mxu0 0
      %1030 = vmatprep.subr.bf16.mxu0 0
      %1031 = vmatpush1.bf16.msra.mxu0 0
      %1032 = vmatprep.mubr.bf16.mxu0 0
      %1033 = vmatmul.mubr.bf16.gmra.mrb[0].mxu0 %v995
      %v1034 = vpop.f32.mrb[0].mxu0
      %v1035 = vadd.f32 0.0, %v1034
      %v1036 = vpop.f32.mrb[0].mxu0
      %v1037 = vpop.f32.mrb[0].mxu0
      %v1038 = vpop.f32.mrb[0].mxu0
      %1039 = vdwg.mxu0
      %v1040 = vadd.f32 %v980, %v1035
      %v1041 = vld [vmem:[%s451] sm:$0x3]
      %s1042 = scalar_lea.vmem %s0, 60
      %v1043 = vld [vmem:[%s1042] sm:$0xf]
      %v1046 = vunpack.c.l.s4 1983009808
      %v1047 = vunpack.c.0.s8 %v1046
      %v1048 = vlaneseq
      %v1049 = vshrl.u32 %v1048, 7
      %v1050 = vsub.s32 %v1047, %v1049
      %v1051 = vrot.slane %v1041, %v1050
      %1052 = vrot.lane.b32.xlu0 %v1051, 118
      %v1053 = vpop.permute.xlu0 %1052
      %v1055 = vsel %vm187, %v1043, 0
      %v1058 = vsel %vm191, %v1053, 0
      %1060 = vmatprep.subr.bf16.mxu0 0
      %1061 = vmatpush1.bf16.msra.mxu0 %v1058
      %1062 = vmatprep.subr.bf16.mxu0 0
      %1063 = vmatpush1.bf16.msra.mxu0 0
      %1064 = vmatprep.subr.bf16.mxu0 0
      %1065 = vmatpush1.bf16.msra.mxu0 0
      %1066 = vmatprep.subr.bf16.mxu0 0
      %1067 = vmatpush1.bf16.msra.mxu0 0
      %1068 = vmatprep.subr.bf16.mxu0 0
      %1069 = vmatpush1.bf16.msra.mxu0 0
      %1070 = vmatprep.subr.bf16.mxu0 0
      %1071 = vmatpush1.bf16.msra.mxu0 0
      %1072 = vmatprep.subr.bf16.mxu0 0
      %1073 = vmatpush1.bf16.msra.mxu0 0
      %1074 = vmatprep.subr.bf16.mxu0 0
      %1075 = vmatpush1.bf16.msra.mxu0 0
      %1076 = vmatprep.subr.bf16.mxu0 0
      %1077 = vmatpush1.bf16.msra.mxu0 0
      %1078 = vmatprep.subr.bf16.mxu0 0
      %1079 = vmatpush1.bf16.msra.mxu0 0
      %1080 = vmatprep.subr.bf16.mxu0 0
      %1081 = vmatpush1.bf16.msra.mxu0 0
      %1082 = vmatprep.subr.bf16.mxu0 0
      %1083 = vmatpush1.bf16.msra.mxu0 0
      %1084 = vmatprep.subr.bf16.mxu0 0
      %1085 = vmatpush1.bf16.msra.mxu0 0
      %1086 = vmatprep.subr.bf16.mxu0 0
      %1087 = vmatpush1.bf16.msra.mxu0 0
      %1088 = vmatprep.subr.bf16.mxu0 0
      %1089 = vmatpush1.bf16.msra.mxu0 0
      %1090 = vmatprep.subr.bf16.mxu0 0
      %1091 = vmatpush1.bf16.msra.mxu0 0
      %1092 = vmatprep.mubr.bf16.mxu0 0
      %1093 = vmatmul.mubr.bf16.gmra.mrb[0].mxu0 %v1055
      %v1094 = vpop.f32.mrb[0].mxu0
      %v1095 = vadd.f32 0.0, %v1094
      %v1096 = vpop.f32.mrb[0].mxu0
      %v1097 = vpop.f32.mrb[0].mxu0
      %v1098 = vpop.f32.mrb[0].mxu0
      %1099 = vdwg.mxu0
      %v1100 = vadd.f32 %v1040, %v1095
      %v1101 = vsub.f32 %v1100, 1.0
      %v1102 = vmul.f32 %v1101, %v1101
      %v1103 = vmul.f32 %v1102, -0.5
      %v1104 = vmul.f32 %v1103, 1.442695
      %v1105 = vpow.pop %v1104
      %vm1106 = vcmp.lt.f32.partialorder %v1100, 1.0
      %v1107 = vmul.f32 %v1105, 1.1
      %v1108 = vmul.f32 %v1105, 0.1
      %v1109 = vadd.f32 %v1108, 1.0
      %v1110 = vsel %vm1106, %v1107, %v1109
      %vm1111 = vcmask 588800
      %1112 = vst.msk [vmem:[%s175] sm:$0xff] %vm1111, %v1110
      %v1113 = vmax.f32 %v1100, 0.0
      %v1114 = vlog2.pop %v1113
      %v1115 = vmul.f32 %v1114, 0.6931472
      %v1116 = vmul.f32 %v1115, 0.8
      %v1117 = vmul.f32 %v1116, 1.442695
      %v1118 = vpow.pop %v1117
      %1119 = vst.msk [vmem:[%s179] sm:$0xff] %vm1111, %v1118
      %p1120 = scmp.lt.s32.totalorder %s15, 1
      %s1121 = scalar_select %p1120, %s15, 1
      %s1122 = smul.addr %s1121, 8
      %s1123 = scalar_lea.vmem %s2, %s1122
      %p1124 = scmp.lt.s32.totalorder %s15, 1
      %s1125 = scalar_select %p1124, %s15, 1
      %s1126 = smul.addr %s1125, 8
      %s1127 = scalar_lea.vmem %s3, %s1126
      // Predicated region
      $region29: #{reverse_mask_conv.1} parent=27 // pred_check
        %p1128 = pneg %p80
      $region30: #{reverse_mask_conv.1} parent=27 // pred_check_branch
        %1130 = sbr.rel (%p1128) target = $region32
      $region31: #{reverse_mask_conv.1} parent=27 // pred_region
        _
      $region32: #{reverse_mask_conv.1} parent=27 // pred_fallthru
        _
      // Predicated region
      $region33: #{reverse_mask_conv.1} parent=27 // pred_check
        %p1131 = pneg %p106
      $region34: #{reverse_mask_conv.1} parent=27 // pred_check_branch
        %1133 = sbr.rel (%p1131) target = $region36
      $region35: #{reverse_mask_conv.1} parent=27 // pred_region
        _
      $region36: #{reverse_mask_conv.1} parent=27 // pred_fallthru
        _
    $region28: #{reverse_mask_conv.1} parent=5 // pred_fallthru
      _
    %p1134 = scmp.le.s32.totalorder 2, %s10
    // Predicated region
    $region37: #{reverse_mask_conv.1} parent=5 // pred_check
      %p1135 = pneg %p1134
    $region38: #{reverse_mask_conv.1} parent=5 // pred_check_branch
      %1137 = sbr.rel (%p1135) target = $region40
    $region39: #{reverse_mask_conv.1} parent=5 // pred_region
      %s1138 = ssub.s32 %s10, 2
      // Predicated region
      $region41: #{reverse_mask_conv.1} parent=39 // pred_check
        %p1139 = pneg %p86
      $region42: #{reverse_mask_conv.1} parent=39 // pred_check_branch
        %1141 = sbr.rel (%p1139) target = $region44
      $region43: #{reverse_mask_conv.1} parent=39 // pred_region
        %p1142 = scmp.lt.s32.totalorder %s16, 1
        %s1143 = scalar_select %p1142, %s16, 1
        %s1144 = smul.addr %s1143, 8
        %s1145 = scalar_lea.vmem %s2, %s1144
      $region44: #{reverse_mask_conv.1} parent=39 // pred_fallthru
        _
      // Predicated region
      $region45: #{reverse_mask_conv.1} parent=39 // pred_check
        %p1146 = pneg %p112
      $region46: #{reverse_mask_conv.1} parent=39 // pred_check_branch
        %1148 = sbr.rel (%p1146) target = $region48
      $region47: #{reverse_mask_conv.1} parent=39 // pred_region
        %p1149 = scmp.lt.s32.totalorder %s16, 1
        %s1150 = scalar_select %p1149, %s16, 1
        %s1151 = smul.addr %s1150, 8
        %s1152 = scalar_lea.vmem %s3, %s1151
      $region48: #{reverse_mask_conv.1} parent=39 // pred_fallthru
        _
    $region40: #{reverse_mask_conv.1} parent=5 // pred_fallthru
      _
  $region6: #{reverse_mask_conv.1} parent=0 // loop_footer
    %s14 = sadd.s32 1, %s10
  $region7: #{reverse_mask_conv.1} parent=0 // loop_footer_branch
    %9 = sbr.rel target = $region3
  $region8: #{reverse_mask_conv.1} parent=0 // loop_exit
    _

</llo_original>
